<compile_context>
chip_gen: v5e
topology: v5e:2x2
jax: 0.10.0
libtpu: 0.0.40
codegen_flags: <defaults>
</compile_context>

<pallas_src>
import jax
import jax.numpy as jnp
from jax.experimental import pallas as pl
from jax.experimental.pallas import tpu as pltpu


def _round_up(n, m):
    return (n + m - 1) // m * m


def recsys_kernel(x_ref, w1_ref, b1_ref, w2_ref, b2_ref, w3_ref, b3_ref, o_ref):
    # NaN imputation (the module's `imputer`): replace NaNs with 0.
    # VPU select; free under the memory-bound regime.
    x = x_ref[...]
    x = jnp.where(jnp.isnan(x), jnp.zeros_like(x), x)

    # linear1 + tanh   (MXU matmul -> f32 acc, EUP tanh)
    h = jnp.dot(x, w1_ref[...], preferred_element_type=jnp.float32) + b1_ref[...]
    h = jnp.tanh(h)

    # linear2 + dropout(eval: identity) + tanh
    h = jnp.dot(h, w2_ref[...], preferred_element_type=jnp.float32) + b2_ref[...]
    h = jnp.tanh(h)

    # linear3 (lane-dense store: padded sites is a multiple of 128)
    o_ref[...] = (
        jnp.dot(h, w3_ref[...], preferred_element_type=jnp.float32) + b3_ref[...]
    ).astype(o_ref.dtype)


def recsys_forward(x, w1, b1, w2, b2, w3, b3, *, batch_tile=None):
    """Runs the recsys forward pass. Weights are (in_features, out_features)."""
    B, S = x.shape
    L = w1.shape[1]
    assert w1.shape == (S, L) and w2.shape == (L, L) and w3.shape == (L, S)

    f32 = jnp.float32

    # Padded (lane-dense) dimensions.
    Sp = _round_up(S, 128)
    Lp = _round_up(L, 128)

    # Batch tile: multiple of 8 sublanes (f32); default 256 rows so batches
    # > 256 get >= 2 grid steps (pipelining + v7x megacore sharding) while
    # keeping each x/out tile at 256*Sp*4 bytes (comfortably in VMEM).
    if batch_tile is None:
        tb = max(8, min(256, _round_up(B, 8)))
    else:
        tb = max(8, _round_up(batch_tile, 8))
    Bp = _round_up(B, tb)
    grid = (Bp // tb,)

    # Zero-pad everything (exactness argued in the header comment).  x/out
    # padding is a tiny one-shot copy relative to the kernel's own traffic.
    xp = jnp.pad(x.astype(f32), ((0, Bp - B), (0, Sp - S)))
    w1p = jnp.pad(w1.astype(f32), ((0, Sp - S), (0, Lp - L)))
    b1p = jnp.pad(jnp.reshape(b1, (1, L)).astype(f32), ((0, 0), (0, Lp - L)))
    w2p = jnp.pad(w2.astype(f32), ((0, Lp - L), (0, Lp - L)))
    b2p = jnp.pad(jnp.reshape(b2, (1, L)).astype(f32), ((0, 0), (0, Lp - L)))
    w3p = jnp.pad(w3.astype(f32), ((0, Lp - L), (0, Sp - S)))
    b3p = jnp.pad(jnp.reshape(b3, (1, S)).astype(f32), ((0, 0), (0, Sp - S)))

    # Constant-index BlockSpecs: weights/biases are fetched once and stay
    # resident in VMEM across every grid step.
    full = lambda shape: pl.BlockSpec(shape, lambda i: (0, 0))

    # Advisory cost estimate (padded shapes).
    flops = 2 * Bp * (Sp * Lp + Lp * Lp + Lp * Sp)
    transcendentals = 2 * Bp * Lp
    bytes_accessed = 4 * (2 * Bp * Sp + Sp * Lp + Lp * Lp + Lp * Sp + 2 * Lp + Sp)

    out = pl.pallas_call(
        recsys_kernel,
        out_shape=jax.ShapeDtypeStruct((Bp, Sp), f32),
        grid_spec=pltpu.PrefetchScalarGridSpec(
            num_scalar_prefetch=0,
            grid=grid,
            in_specs=[
                pl.BlockSpec((tb, Sp), lambda i: (i, 0)),  # x (batch-tiled)
                full((Sp, Lp)),                            # w1
                full((1, Lp)),                             # b1
                full((Lp, Lp)),                            # w2
                full((1, Lp)),                             # b2
                full((Lp, Sp)),                            # w3
                full((1, Sp)),                             # b3
            ],
            out_specs=pl.BlockSpec((tb, Sp), lambda i: (i, 0)),
        ),
        compiler_params=pltpu.CompilerParams(
            dimension_semantics=("parallel",),
        ),
        cost_estimate=pl.CostEstimate(
            flops=flops,
            transcendentals=transcendentals,
            bytes_accessed=bytes_accessed,
        ),
    )(xp, w1p, b1p, w2p, b2p, w3p, b3p)

    # Strip batch/site padding.
    return out[:B, :S]


def _reference(x, w1, b1, w2, b2, w3, b3):
    x = jnp.where(jnp.isnan(x), 0.0, x)
    h = jnp.tanh(x @ w1 + b1)
    h = jnp.tanh(h @ w2 + b2)
    return h @ w3 + b3


if __name__ == "__main__":
    # Shapes consistent with the module defaults (batch_size=500,
    # latent_features=10); sites kept modest but deliberately NOT a multiple
    # of 128, so the padding path and the multi-step batch grid are both
    # exercised.
    batch = 500
    sites = 250
    latent = 10

    key = jax.random.PRNGKey(0)
    kx, k1, k2, k3, k4, k5, k6 = jax.random.split(key, 7)

    # Ratings matrix with a few NaNs to exercise the imputer path.
    x = jax.random.normal(kx, (batch, sites), dtype=jnp.float32)
    x = x.at[0, 3].set(jnp.nan).at[123, 200].set(jnp.nan).at[499, 0].set(jnp.nan)

    # Deterministic parameter init (PyTorch nn.Linear-style uniform bounds),
    # stored as (in_features, out_features).
    def init_linear(kw, kb, fan_in, fan_out):
        bound = 1.0 / jnp.sqrt(fan_in)
        w = jax.random.uniform(kw, (fan_in, fan_out), jnp.float32, -bound, bound)
        b = jax.random.uniform(kb, (1, fan_out), jnp.float32, -bound, bound)
        return w, b

    w1, b1 = init_linear(k1, k2, sites, latent)
    w2, b2 = init_linear(k3, k4, latent, latent)
    w3, b3 = init_linear(k5, k6, latent, sites)

    out = recsys_forward(x, w1, b1, w2, b2, w3, b3)
    out = jax.block_until_ready(out)

    ref = _reference(x, w1, b1, w2, b2, w3, b3)
    assert out.shape == (batch, sites)
    assert jnp.allclose(out, ref, atol=1e-4, rtol=1e-4), "mismatch vs reference"
    assert not jnp.any(jnp.isnan(out)), "NaNs leaked through imputer"

    print("KERNEL_OK")
</pallas_src>

<mosaic_0001>
module attributes {stable_mosaic.version = 11 : i64} {
  func.func @recsys_kernel(%arg0: i32, %arg1: memref<256x256xf32, #tpu.memory_space<vmem>>, %arg2: memref<256x128xf32, #tpu.memory_space<vmem>>, %arg3: memref<1x128xf32, #tpu.memory_space<vmem>>, %arg4: memref<128x128xf32, #tpu.memory_space<vmem>>, %arg5: memref<1x128xf32, #tpu.memory_space<vmem>>, %arg6: memref<128x256xf32, #tpu.memory_space<vmem>>, %arg7: memref<1x256xf32, #tpu.memory_space<vmem>>, %arg8: memref<256x256xf32, #tpu.memory_space<vmem>>) attributes {dimension_semantics = [#tpu.dimension_semantics<parallel>], iteration_bounds = array<i64: 2>, scalar_prefetch = 0 : i64, scratch_operands = 0 : i64, tpu.core_type = #tpu.core_type<tc>, window_params = [{transform_indices = @transform_0, window_bounds = array<i64: 256, 256>}, {pipeline_mode = #tpu.pipeline_mode<synchronous>, transform_indices = @transform_1, window_bounds = array<i64: 256, 128>}, {pipeline_mode = #tpu.pipeline_mode<synchronous>, transform_indices = @transform_2, window_bounds = array<i64: 1, 128>}, {pipeline_mode = #tpu.pipeline_mode<synchronous>, transform_indices = @transform_3, window_bounds = array<i64: 128, 128>}, {pipeline_mode = #tpu.pipeline_mode<synchronous>, transform_indices = @transform_4, window_bounds = array<i64: 1, 128>}, {pipeline_mode = #tpu.pipeline_mode<synchronous>, transform_indices = @transform_5, window_bounds = array<i64: 128, 256>}, {pipeline_mode = #tpu.pipeline_mode<synchronous>, transform_indices = @transform_6, window_bounds = array<i64: 1, 256>}, {transform_indices = @transform_7, window_bounds = array<i64: 256, 256>}]} {
    %c0 = arith.constant 0 : index
    %c0_0 = arith.constant 0 : index
    %0 = vector.load %arg1[%c0, %c0_0] : memref<256x256xf32, #tpu.memory_space<vmem>>, vector<256x256xf32>
    %1 = arith.cmpf one, %0, %0 : vector<256x256xf32>
    %cst = arith.constant 0.000000e+00 : f32
    %2 = vector.broadcast %cst : f32 to vector<256x256xf32>
    %3 = arith.select %1, %2, %0 : vector<256x256xi1>, vector<256x256xf32>
    %c0_1 = arith.constant 0 : index
    %c0_2 = arith.constant 0 : index
    %4 = vector.load %arg2[%c0_1, %c0_2] : memref<256x128xf32, #tpu.memory_space<vmem>>, vector<256x128xf32>
    %cst_3 = arith.constant dense<0.000000e+00> : vector<256x128xf32>
    %5 = tpu.matmul %3, %4, %cst_3 {dimension_numbers = #tpu.dot_dimension_numbers<[1], [0], [0], [1], [0, 0, 1, 1], [], []>} : vector<256x256xf32>, vector<256x128xf32>, vector<256x128xf32> -> vector<256x128xf32>
    %c0_4 = arith.constant 0 : index
    %c0_5 = arith.constant 0 : index
    %6 = vector.load %arg3[%c0_4, %c0_5] : memref<1x128xf32, #tpu.memory_space<vmem>>, vector<1x128xf32>
    %7 = vector.broadcast %6 : vector<1x128xf32> to vector<256x128xf32>
    %8 = arith.addf %5, %7 : vector<256x128xf32>
    %9 = math.tanh %8 : vector<256x128xf32>
    %c0_6 = arith.constant 0 : index
    %c0_7 = arith.constant 0 : index
    %10 = vector.load %arg4[%c0_6, %c0_7] : memref<128x128xf32, #tpu.memory_space<vmem>>, vector<128x128xf32>
    %cst_8 = arith.constant dense<0.000000e+00> : vector<256x128xf32>
    %11 = tpu.matmul %9, %10, %cst_8 {dimension_numbers = #tpu.dot_dimension_numbers<[1], [0], [0], [1], [0, 0, 1, 1], [], []>} : vector<256x128xf32>, vector<128x128xf32>, vector<256x128xf32> -> vector<256x128xf32>
    %c0_9 = arith.constant 0 : index
    %c0_10 = arith.constant 0 : index
    %12 = vector.load %arg5[%c0_9, %c0_10] : memref<1x128xf32, #tpu.memory_space<vmem>>, vector<1x128xf32>
    %13 = vector.broadcast %12 : vector<1x128xf32> to vector<256x128xf32>
    %14 = arith.addf %11, %13 : vector<256x128xf32>
    %15 = math.tanh %14 : vector<256x128xf32>
    %c0_11 = arith.constant 0 : index
    %c0_12 = arith.constant 0 : index
    %16 = vector.load %arg6[%c0_11, %c0_12] : memref<128x256xf32, #tpu.memory_space<vmem>>, vector<128x256xf32>
    %cst_13 = arith.constant dense<0.000000e+00> : vector<256x256xf32>
    %17 = tpu.matmul %15, %16, %cst_13 {dimension_numbers = #tpu.dot_dimension_numbers<[1], [0], [0], [1], [0, 0, 1, 1], [], []>} : vector<256x128xf32>, vector<128x256xf32>, vector<256x256xf32> -> vector<256x256xf32>
    %c0_14 = arith.constant 0 : index
    %c0_15 = arith.constant 0 : index
    %18 = vector.load %arg7[%c0_14, %c0_15] : memref<1x256xf32, #tpu.memory_space<vmem>>, vector<1x256xf32>
    %19 = vector.broadcast %18 : vector<1x256xf32> to vector<256x256xf32>
    %20 = arith.addf %17, %19 : vector<256x256xf32>
    %c0_16 = arith.constant 0 : index
    %c0_17 = arith.constant 0 : index
    %21 = vector.load %arg8[%c0_16, %c0_17] : memref<256x256xf32, #tpu.memory_space<vmem>>, vector<256x256xf32>
    tpu.vector_store %arg8[%c0_16, %c0_17], %20 {strides = array<i32>} : memref<256x256xf32, #tpu.memory_space<vmem>>, vector<256x256xf32>,
    return
  }
  func.func @transform_0(%arg0: i32) -> (i32, i32) {
    %c0_i32 = arith.constant 0 : i32
    %c0_i32_0 = arith.constant 0 : i32
    return %arg0, %c0_i32 : i32, i32
  }
  func.func @transform_1(%arg0: i32) -> (i32, i32) {
    %c0_i32 = arith.constant 0 : i32
    %c0_i32_0 = arith.constant 0 : i32
    %c0_i32_1 = arith.constant 0 : i32
    return %c0_i32, %c0_i32_0 : i32, i32
  }
  func.func @transform_2(%arg0: i32) -> (i32, i32) {
    %c0_i32 = arith.constant 0 : i32
    %c0_i32_0 = arith.constant 0 : i32
    %c0_i32_1 = arith.constant 0 : i32
    return %c0_i32, %c0_i32_0 : i32, i32
  }
  func.func @transform_3(%arg0: i32) -> (i32, i32) {
    %c0_i32 = arith.constant 0 : i32
    %c0_i32_0 = arith.constant 0 : i32
    %c0_i32_1 = arith.constant 0 : i32
    return %c0_i32, %c0_i32_0 : i32, i32
  }
  func.func @transform_4(%arg0: i32) -> (i32, i32) {
    %c0_i32 = arith.constant 0 : i32
    %c0_i32_0 = arith.constant 0 : i32
    %c0_i32_1 = arith.constant 0 : i32
    return %c0_i32, %c0_i32_0 : i32, i32
  }
  func.func @transform_5(%arg0: i32) -> (i32, i32) {
    %c0_i32 = arith.constant 0 : i32
    %c0_i32_0 = arith.constant 0 : i32
    %c0_i32_1 = arith.constant 0 : i32
    return %c0_i32, %c0_i32_0 : i32, i32
  }
  func.func @transform_6(%arg0: i32) -> (i32, i32) {
    %c0_i32 = arith.constant 0 : i32
    %c0_i32_0 = arith.constant 0 : i32
    %c0_i32_1 = arith.constant 0 : i32
    return %c0_i32, %c0_i32_0 : i32, i32
  }
  func.func @transform_7(%arg0: i32) -> (i32, i32) {
    %c0_i32 = arith.constant 0 : i32
    %c0_i32_0 = arith.constant 0 : i32
    return %arg0, %c0_i32 : i32, i32
  }
}

</mosaic_0001>

<llo_original>
// kernel: tpu_custom_call.1
$region0: #{tpu_custom_call.1}
  #allocation0 [shape = 'u32[]', space=smem, size = 0x4, offset = 0x4, fixed_abs, tag = 'smem constant byte address 0x4 - core index']
  #allocation1 [shape = 'u32[72,128]{1,0:T(1,128)}', space=vmem, size = 0x9000, scoped, tag = 'internal scratch']
  %s0 = inlined_call_operand.hbm [shape: f32[512,256], index: 0, kind: input, shape index: {}]
  %s1 = inlined_call_operand.hbm [shape: f32[256,128], index: 1, kind: input, shape index: {}]
  %s2 = inlined_call_operand.vmem [shape: f32[1,128], index: 2, kind: input, shape index: {}]
  %s3 = inlined_call_operand.hbm [shape: f32[128,128], index: 3, kind: input, shape index: {}]
  %s4 = inlined_call_operand.hbm [shape: f32[1,128], index: 4, kind: input, shape index: {}]
  %s5 = inlined_call_operand.hbm [shape: f32[128,256], index: 5, kind: input, shape index: {}]
  %s6 = inlined_call_operand.vmem [shape: f32[1,256], index: 6, kind: input, shape index: {}]
  %s7 = inlined_call_operand.hbm [shape: f32[512,256], index: 7, kind: output, shape index: {}]
  %s8 = sld [smem:[#allocation0]]
  $region81: #{tpu_custom_call.1} parent=0
    _
  %s10 = ssub.s32 1, %s8
  %s11 = scalar_select 0, %s10, %s8
  $region1: #{tpu_custom_call.1} parent=0
    #allocation2 [shape = 'u8[524288]{0}', space=vmem, size = 0x80000, scoped, tag = 'input window, operand 0']
    #allocation3 [shape = 's32[2]{0}', space=sflag, size = 0x8, scoped, tag = 'scoped memory for tpu_custom_call.1']
    #allocation4 [shape = 's32[2]{0}', space=sflag, size = 0x8, scoped, tag = 'scoped memory for tpu_custom_call.1']
    #allocation5 [shape = 'u8[131072]{0}', space=vmem, size = 0x20000, scoped, tag = 'input window, operand 1, single buffered']
    #allocation6 [shape = 's32[1]{0}', space=sflag, size = 0x4, scoped, tag = 'scoped memory for tpu_custom_call.1']
    #allocation7 [shape = 'u8[65536]{0}', space=vmem, size = 0x10000, scoped, tag = 'input window, operand 3, single buffered']
    #allocation8 [shape = 'u8[512]{0}', space=vmem, size = 0x400, scoped, tag = 'input window, operand 4, single buffered']
    #allocation9 [shape = 's32[1]{0}', space=sflag, size = 0x4, scoped, tag = 'scoped memory for tpu_custom_call.1']
    #allocation10 [shape = 'u8[131072]{0}', space=vmem, size = 0x20000, scoped, tag = 'input window, operand 5, single buffered']
    #allocation11 [shape = 'u8[524288]{0}', space=vmem, size = 0x80000, scoped, tag = 'output window, operand 0']
    %12 = vsyncpa [#allocation3], 0
    %s13 = scalar_lea.sflag [#allocation3], 1
    %14 = vsyncpa %s13, 0
    %15 = vsyncpa [#allocation6], 0
    %16 = vsyncpa [#allocation9], 0
    %17 = vsyncpa [#allocation4], 0
    %s18 = scalar_lea.sflag [#allocation4], 1
    %19 = vsyncpa %s18, 0
    loop: start=0, step=1, limit=4
    $region2: #{tpu_custom_call.1} parent=1 // loop_pre_header
      _
    $region3: #{tpu_custom_call.1} parent=1 // loop_header
      %s21 = sphi 0, %s25
      %p22 = scmp.ge.s32.totalorder %s21, 4
      %s31 = sphi 0, %s33
      %s34 = sphi 0, %s31
      %s35 = sphi 0, %s34
      %s51 = sphi 0, %s35
      %s55 = sphi 0, %s55
      %s57 = sphi 0, %s55
      %s58 = sphi 0, %s57
      %s72 = sphi 0, %s58
      %s76 = sphi 0, %s76
      %s78 = sphi 0, %s76
      %s79 = sphi 0, %s78
      %s93 = sphi 0, %s79
      %s97 = sphi 0, %s97
      %s99 = sphi 0, %s97
      %s100 = sphi 0, %s99
      %s114 = sphi 0, %s100
      %s118 = sphi 0, %s118
      %s120 = sphi 0, %s118
      %s121 = sphi 0, %s120
      %s135 = sphi 0, %s121
      %s139 = sphi 0, %s139
      %s141 = sphi 0, %s139
      %s142 = sphi 0, %s141
      %s156 = sphi 0, %s142
      %s160 = sphi 0, %s160
      %s162 = sphi 0, %s160
      %s163 = sphi 0, %s162
      %s177 = sphi 0, %s163
      %s183 = sphi 0, %s185
      %s186 = sphi 0, %s183
      %s187 = sphi 0, %s186
      %s203 = sphi 0, %s187
    $region4: #{tpu_custom_call.1} parent=1 // loop_header_branch
      %24 = sbr.rel (%p22) target = $region8
    $region5: #{tpu_custom_call.1} parent=1 // loop_body
      %s26 = ssub.s32 %s21, 1
      %s27 = ssub.s32 %s21, 2
      %s28 = sadd.s32 %s21, 1
      %s29 = ssub.s32 %s21, %s28
      %p30 = scmp.eq.s32.totalorder %s29, 0
      %s32 = sadd.s32 %s31, 1
      %s33 = scalar_select %p30, %s31, %s32
      %p36 = pneg %p30
      %p37 = scmp.eq.s32.totalorder %s21, 1
      %p38 = por %p36, %p37
      %p39 = scmp.ne.s32.totalorder %s31, %s34
      %p40 = scmp.eq.s32.totalorder %s21, 0
      %p41 = por %p39, %p40
      %p42 = scmp.ne.s32.totalorder %s31, %s34
      %p43 = scmp.eq.s32.totalorder %s26, 1
      %p44 = por %p42, %p43
      %p45 = scmp.ne.s32.totalorder %s34, %s35
      %p46 = scmp.eq.s32.totalorder %s26, 0
      %p47 = por %p45, %p46
      %p48 = scmp.ne.s32.totalorder %s34, %s35
      %p49 = scmp.eq.s32.totalorder %s27, 1
      %p50 = por %p48, %p49
      %p52 = scmp.ne.s32.totalorder %s35, %s51
      %p53 = scmp.eq.s32.totalorder %s27, 0
      %p54 = por %p52, %p53
      %s56 = sadd.s32 %s55, 1
      %p59 = scmp.eq.s32.totalorder %s21, 1
      %p60 = scmp.ne.s32.totalorder %s55, %s57
      %p61 = scmp.eq.s32.totalorder %s21, 0
      %p62 = por %p60, %p61
      %p63 = scmp.ne.s32.totalorder %s55, %s57
      %p64 = scmp.eq.s32.totalorder %s26, 1
      %p65 = por %p63, %p64
      %p66 = scmp.ne.s32.totalorder %s57, %s58
      %p67 = scmp.eq.s32.totalorder %s26, 0
      %p68 = por %p66, %p67
      %p69 = scmp.ne.s32.totalorder %s57, %s58
      %p70 = scmp.eq.s32.totalorder %s27, 1
      %p71 = por %p69, %p70
      %p73 = scmp.ne.s32.totalorder %s58, %s72
      %p74 = scmp.eq.s32.totalorder %s27, 0
      %p75 = por %p73, %p74
      %s77 = sadd.s32 %s76, 1
      %p80 = scmp.eq.s32.totalorder %s21, 1
      %p81 = scmp.ne.s32.totalorder %s76, %s78
      %p82 = scmp.eq.s32.totalorder %s21, 0
      %p83 = por %p81, %p82
      %p84 = scmp.ne.s32.totalorder %s76, %s78
      %p85 = scmp.eq.s32.totalorder %s26, 1
      %p86 = por %p84, %p85
      %p87 = scmp.ne.s32.totalorder %s78, %s79
      %p88 = scmp.eq.s32.totalorder %s26, 0
      %p89 = por %p87, %p88
      %p90 = scmp.ne.s32.totalorder %s78, %s79
      %p91 = scmp.eq.s32.totalorder %s27, 1
      %p92 = por %p90, %p91
      %p94 = scmp.ne.s32.totalorder %s79, %s93
      %p95 = scmp.eq.s32.totalorder %s27, 0
      %p96 = por %p94, %p95
      %s98 = sadd.s32 %s97, 1
      %p101 = scmp.eq.s32.totalorder %s21, 1
      %p102 = scmp.ne.s32.totalorder %s97, %s99
      %p103 = scmp.eq.s32.totalorder %s21, 0
      %p104 = por %p102, %p103
      %p105 = scmp.ne.s32.totalorder %s97, %s99
      %p106 = scmp.eq.s32.totalorder %s26, 1
      %p107 = por %p105, %p106
      %p108 = scmp.ne.s32.totalorder %s99, %s100
      %p109 = scmp.eq.s32.totalorder %s26, 0
      %p110 = por %p108, %p109
      %p111 = scmp.ne.s32.totalorder %s99, %s100
      %p112 = scmp.eq.s32.totalorder %s27, 1
      %p113 = por %p111, %p112
      %p115 = scmp.ne.s32.totalorder %s100, %s114
      %p116 = scmp.eq.s32.totalorder %s27, 0
      %p117 = por %p115, %p116
      %s119 = sadd.s32 %s118, 1
      %p122 = scmp.eq.s32.totalorder %s21, 1
      %p123 = scmp.ne.s32.totalorder %s118, %s120
      %p124 = scmp.eq.s32.totalorder %s21, 0
      %p125 = por %p123, %p124
      %p126 = scmp.ne.s32.totalorder %s118, %s120
      %p127 = scmp.eq.s32.totalorder %s26, 1
      %p128 = por %p126, %p127
      %p129 = scmp.ne.s32.totalorder %s120, %s121
      %p130 = scmp.eq.s32.totalorder %s26, 0
      %p131 = por %p129, %p130
      %p132 = scmp.ne.s32.totalorder %s120, %s121
      %p133 = scmp.eq.s32.totalorder %s27, 1
      %p134 = por %p132, %p133
      %p136 = scmp.ne.s32.totalorder %s121, %s135
      %p137 = scmp.eq.s32.totalorder %s27, 0
      %p138 = por %p136, %p137
      %s140 = sadd.s32 %s139, 1
      %p143 = scmp.eq.s32.totalorder %s21, 1
      %p144 = scmp.ne.s32.totalorder %s139, %s141
      %p145 = scmp.eq.s32.totalorder %s21, 0
      %p146 = por %p144, %p145
      %p147 = scmp.ne.s32.totalorder %s139, %s141
      %p148 = scmp.eq.s32.totalorder %s26, 1
      %p149 = por %p147, %p148
      %p150 = scmp.ne.s32.totalorder %s141, %s142
      %p151 = scmp.eq.s32.totalorder %s26, 0
      %p152 = por %p150, %p151
      %p153 = scmp.ne.s32.totalorder %s141, %s142
      %p154 = scmp.eq.s32.totalorder %s27, 1
      %p155 = por %p153, %p154
      %p157 = scmp.ne.s32.totalorder %s142, %s156
      %p158 = scmp.eq.s32.totalorder %s27, 0
      %p159 = por %p157, %p158
      %s161 = sadd.s32 %s160, 1
      %p164 = scmp.eq.s32.totalorder %s21, 1
      %p165 = scmp.ne.s32.totalorder %s160, %s162
      %p166 = scmp.eq.s32.totalorder %s21, 0
      %p167 = por %p165, %p166
      %p168 = scmp.ne.s32.totalorder %s160, %s162
      %p169 = scmp.eq.s32.totalorder %s26, 1
      %p170 = por %p168, %p169
      %p171 = scmp.ne.s32.totalorder %s162, %s163
      %p172 = scmp.eq.s32.totalorder %s26, 0
      %p173 = por %p171, %p172
      %p174 = scmp.ne.s32.totalorder %s162, %s163
      %p175 = scmp.eq.s32.totalorder %s27, 1
      %p176 = por %p174, %p175
      %p178 = scmp.ne.s32.totalorder %s163, %s177
      %p179 = scmp.eq.s32.totalorder %s27, 0
      %p180 = por %p178, %p179
      %s181 = ssub.s32 %s21, %s28
      %p182 = scmp.eq.s32.totalorder %s181, 0
      %s184 = sadd.s32 %s183, 1
      %s185 = scalar_select %p182, %s183, %s184
      %p188 = pneg %p182
      %p189 = scmp.eq.s32.totalorder %s21, 1
      %p190 = por %p188, %p189
      %p191 = scmp.ne.s32.totalorder %s183, %s186
      %p192 = scmp.eq.s32.totalorder %s21, 0
      %p193 = por %p191, %p192
      %p194 = scmp.ne.s32.totalorder %s183, %s186
      %p195 = scmp.eq.s32.totalorder %s26, 1
      %p196 = por %p194, %p195
      %p197 = scmp.ne.s32.totalorder %s186, %s187
      %p198 = scmp.eq.s32.totalorder %s26, 0
      %p199 = por %p197, %p198
      %p200 = scmp.ne.s32.totalorder %s186, %s187
      %p201 = scmp.eq.s32.totalorder %s27, 1
      %p202 = por %p200, %p201
      %p204 = scmp.ne.s32.totalorder %s187, %s203
      %p205 = scmp.eq.s32.totalorder %s27, 0
      %p206 = por %p204, %p205
      %p207 = scmp.le.s32.totalorder 1, %s21
      %p208 = scmp.lt.s32.totalorder %s21, 3
      %p209 = pnand %p207, %p208
      %p210 = pneg %p209
      // Predicated region
      $region9: #{tpu_custom_call.1} parent=5 // pred_check
        _
      $region10: #{tpu_custom_call.1} parent=5 // pred_check_branch
        %212 = sbr.rel (%p209) target = $region12
      $region11: #{tpu_custom_call.1} parent=5 // pred_region
        %s213 = ssub.s32 %s21, 1
        // Predicated region
        $region13: #{tpu_custom_call.1} parent=11 // pred_check
          %p214 = pneg %p68
        $region14: #{tpu_custom_call.1} parent=11 // pred_check_branch
          %216 = sbr.rel (%p214) target = $region16
        $region15: #{tpu_custom_call.1} parent=11 // pred_region
          %218 = vsyncadd [#allocation6], 0
          %s219 = sshll.u32 %s1, 4
          %s220 = int_to_ptr.hbm [resolvable:$true] %s219
          %s221 = sshll.u32 [#allocation5], 4
          %s222 = int_to_ptr.vmem [resolvable:$true] %s221
          %227 = dma.hbm_to_vmem [thread:$0]  %s220, 4096, %s222, [#allocation6], 128, 128, 8
        $region16: #{tpu_custom_call.1} parent=11 // pred_fallthru
          _
        // Predicated region
        $region17: #{tpu_custom_call.1} parent=11 // pred_check
          %p228 = pneg %p89
        $region18: #{tpu_custom_call.1} parent=11 // pred_check_branch
          %230 = sbr.rel (%p228) target = $region20
        $region19: #{tpu_custom_call.1} parent=11 // pred_region
          _
        $region20: #{tpu_custom_call.1} parent=11 // pred_fallthru
          _
        // Predicated region
        $region21: #{tpu_custom_call.1} parent=11 // pred_check
          %p231 = pneg %p110
        $region22: #{tpu_custom_call.1} parent=11 // pred_check_branch
          %233 = sbr.rel (%p231) target = $region24
        $region23: #{tpu_custom_call.1} parent=11 // pred_region
          %235 = vsyncadd [#allocation6], 0
          %s236 = sshll.u32 %s3, 4
          %s237 = int_to_ptr.hbm [resolvable:$true] %s236
          %s238 = sshll.u32 [#allocation7], 4
          %s239 = int_to_ptr.vmem [resolvable:$true] %s238
          %244 = dma.hbm_to_vmem [thread:$0]  %s237, 2048, %s239, [#allocation6], 128, 128, 8
        $region24: #{tpu_custom_call.1} parent=11 // pred_fallthru
          _
        // Predicated region
        $region25: #{tpu_custom_call.1} parent=11 // pred_check
          %p245 = pneg %p131
        $region26: #{tpu_custom_call.1} parent=11 // pred_check_branch
          %247 = sbr.rel (%p245) target = $region28
        $region27: #{tpu_custom_call.1} parent=11 // pred_region
          %249 = vsyncadd [#allocation9], 0
          %s251 = sshll.u32 %s4, 4
          %s252 = int_to_ptr.hbm [resolvable:$true] %s251
          %s253 = sshll.u32 [#allocation8], 4
          %s254 = int_to_ptr.vmem [resolvable:$true] %s253
          %256 = dma.hbm_to_vmem [thread:$0]  %s252, 16, %s254, [#allocation9]
        $region28: #{tpu_custom_call.1} parent=11 // pred_fallthru
          _
        // Predicated region
        $region29: #{tpu_custom_call.1} parent=11 // pred_check
          %p257 = pneg %p152
        $region30: #{tpu_custom_call.1} parent=11 // pred_check_branch
          %259 = sbr.rel (%p257) target = $region32
        $region31: #{tpu_custom_call.1} parent=11 // pred_region
          %261 = vsyncadd [#allocation9], 0
          %s262 = sshll.u32 %s5, 4
          %s263 = int_to_ptr.hbm [resolvable:$true] %s262
          %s264 = sshll.u32 [#allocation10], 4
          %s265 = int_to_ptr.vmem [resolvable:$true] %s264
          %270 = dma.hbm_to_vmem [thread:$0]  %s263, 4096, %s265, [#allocation9], 256, 256, 16
        $region32: #{tpu_custom_call.1} parent=11 // pred_fallthru
          _
        // Predicated region
        $region33: #{tpu_custom_call.1} parent=11 // pred_check
          %p271 = pneg %p173
        $region34: #{tpu_custom_call.1} parent=11 // pred_check_branch
          %273 = sbr.rel (%p271) target = $region36
        $region35: #{tpu_custom_call.1} parent=11 // pred_region
          _
        $region36: #{tpu_custom_call.1} parent=11 // pred_fallthru
          _
      $region12: #{tpu_custom_call.1} parent=5 // pred_fallthru
        _
      %p274 = scmp.lt.s32.totalorder %s21, 2
      // Predicated region
      $region37: #{tpu_custom_call.1} parent=5 // pred_check
        %p275 = pneg %p274
      $region38: #{tpu_custom_call.1} parent=5 // pred_check_branch
        %277 = sbr.rel (%p275) target = $region40
      $region39: #{tpu_custom_call.1} parent=5 // pred_region
        // Predicated region
        $region41: #{tpu_custom_call.1} parent=39 // pred_check
          %p278 = pneg %p41
        $region42: #{tpu_custom_call.1} parent=39 // pred_check_branch
          %280 = sbr.rel (%p278) target = $region44
        $region43: #{tpu_custom_call.1} parent=39 // pred_region
          %s281 = sand.u32 %s31, 1
          %s282 = scalar_lea.sflag [#allocation3], %s281
          %s283 = sand.u32 %s31, 1
          %s284 = smul.addr %s283, 512
          %s285 = scalar_lea.vmem [#allocation2], %s284
          %s286 = smul.u32 32, %s21
          %288 = vsyncadd %s282, 0
          %s289 = smul.addr %s286, 2
          %s290 = smul.addr %s289, 8
          %s291 = scalar_lea.hbm %s0, %s290
          %s292 = sshll.u32 %s291, 4
          %s293 = int_to_ptr.hbm [resolvable:$true] %s292
          %s294 = sshll.u32 %s285, 4
          %s295 = int_to_ptr.vmem [resolvable:$true] %s294
          %300 = dma.hbm_to_vmem [thread:$0]  %s293, 8192, %s295, %s282, 256, 256, 16
        $region44: #{tpu_custom_call.1} parent=39 // pred_fallthru
          _
      $region40: #{tpu_custom_call.1} parent=5 // pred_fallthru
        _
      %p301 = scmp.le.s32.totalorder 1, %s21
      %p302 = scmp.lt.s32.totalorder %s21, 3
      %p303 = pnand %p301, %p302
      %p304 = pneg %p303
      // Predicated region
      $region45: #{tpu_custom_call.1} parent=5 // pred_check
        _
      $region46: #{tpu_custom_call.1} parent=5 // pred_check_branch
        %306 = sbr.rel (%p303) target = $region48
      $region47: #{tpu_custom_call.1} parent=5 // pred_region
        %s307 = ssub.s32 %s21, 1
        %s308 = sand.u32 %s34, 1
        %s309 = scalar_lea.sflag [#allocation3], %s308
        %s310 = sand.u32 %s34, 1
        %s311 = smul.addr %s310, 512
        %s312 = scalar_lea.vmem [#allocation2], %s311
        // Predicated region
        $region49: #{tpu_custom_call.1} parent=47 // pred_check
          %p313 = pneg %p47
        $region50: #{tpu_custom_call.1} parent=47 // pred_check_branch
          %315 = sbr.rel (%p313) target = $region52
        $region51: #{tpu_custom_call.1} parent=47 // pred_region
          %317 = dma.done %s309, 8192
        $region52: #{tpu_custom_call.1} parent=47 // pred_fallthru
          _
        // Predicated region
        $region53: #{tpu_custom_call.1} parent=47 // pred_check
          %p318 = pneg %p68
        $region54: #{tpu_custom_call.1} parent=47 // pred_check_branch
          %320 = sbr.rel (%p318) target = $region56
        $region55: #{tpu_custom_call.1} parent=47 // pred_region
          %322 = dma.done [#allocation6], 4096
        $region56: #{tpu_custom_call.1} parent=47 // pred_fallthru
          _
        // Predicated region
        $region57: #{tpu_custom_call.1} parent=47 // pred_check
          %p323 = pneg %p110
        $region58: #{tpu_custom_call.1} parent=47 // pred_check_branch
          %325 = sbr.rel (%p323) target = $region60
        $region59: #{tpu_custom_call.1} parent=47 // pred_region
          %327 = dma.done [#allocation6], 2048
        $region60: #{tpu_custom_call.1} parent=47 // pred_fallthru
          _
        // Predicated region
        $region61: #{tpu_custom_call.1} parent=47 // pred_check
          %p328 = pneg %p131
        $region62: #{tpu_custom_call.1} parent=47 // pred_check_branch
          %330 = sbr.rel (%p328) target = $region64
        $region63: #{tpu_custom_call.1} parent=47 // pred_region
          %332 = dma.done [#allocation9], 16
        $region64: #{tpu_custom_call.1} parent=47 // pred_fallthru
          _
        // Predicated region
        $region65: #{tpu_custom_call.1} parent=47 // pred_check
          %p333 = pneg %p152
        $region66: #{tpu_custom_call.1} parent=47 // pred_check_branch
          %335 = sbr.rel (%p333) target = $region68
        $region67: #{tpu_custom_call.1} parent=47 // pred_region
          %337 = dma.done [#allocation9], 4096
        $region68: #{tpu_custom_call.1} parent=47 // pred_fallthru
          _
        %s338 = sand.u32 %s34, 1
        %s339 = scalar_lea.sflag [#allocation3], %s338
        %s340 = sand.u32 %s34, 1
        %s341 = smul.addr %s340, 512
        %s342 = scalar_lea.vmem [#allocation2], %s341
        %p343 = pneg %p47
        %p344 = pneg %p44
        %p345 = pneg %p68
        %p346 = pneg %p65
        %p347 = pneg %p89
        %p348 = pneg %p86
        %p349 = pneg %p110
        %p350 = pneg %p107
        %p351 = pneg %p131
        %p352 = pneg %p128
        %p353 = pneg %p152
        %p354 = pneg %p149
        %p355 = pneg %p173
        %p356 = pneg %p170
        %p357 = pneg %p199
        %p358 = pneg %p196
        %s359 = sand.u32 %s186, 1
        %s360 = scalar_lea.sflag [#allocation4], %s359
        %s361 = sand.u32 %s186, 1
        %s362 = smul.addr %s361, 512
        %s363 = scalar_lea.vmem [#allocation11], %s362
        %s364 = smul.u32 32, %s26
        %s365 = smul.u32 32, %s26
        %v366 = vld [vmem:[%s312] sm:$0xff]
        %v367 = vld [vmem:[%s312 + $0x8] sm:$0xff]
        %v368 = vld [vmem:[%s312 + $0x10] sm:$0xff]
        %v369 = vld [vmem:[%s312 + $0x18] sm:$0xff]
        %v370 = vld [vmem:[%s312 + $0x20] sm:$0xff]
        %v371 = vld [vmem:[%s312 + $0x28] sm:$0xff]
        %v372 = vld [vmem:[%s312 + $0x30] sm:$0xff]
        %v373 = vld [vmem:[%s312 + $0x38] sm:$0xff]
        %v374 = vld [vmem:[%s312 + $0x40] sm:$0xff]
        %v375 = vld [vmem:[%s312 + $0x48] sm:$0xff]
        %v376 = vld [vmem:[%s312 + $0x50] sm:$0xff]
        %v377 = vld [vmem:[%s312 + $0x58] sm:$0xff]
        %v378 = vld [vmem:[%s312 + $0x60] sm:$0xff]
        %v379 = vld [vmem:[%s312 + $0x68] sm:$0xff]
        %v380 = vld [vmem:[%s312 + $0x70] sm:$0xff]
        %v381 = vld [vmem:[%s312 + $0x78] sm:$0xff]
        %v382 = vld [vmem:[%s312 + $0x80] sm:$0xff]
        %v383 = vld [vmem:[%s312 + $0x88] sm:$0xff]
        %v384 = vld [vmem:[%s312 + $0x90] sm:$0xff]
        %v385 = vld [vmem:[%s312 + $0x98] sm:$0xff]
        %v386 = vld [vmem:[%s312 + $0xa0] sm:$0xff]
        %v387 = vld [vmem:[%s312 + $0xa8] sm:$0xff]
        %v388 = vld [vmem:[%s312 + $0xb0] sm:$0xff]
        %v389 = vld [vmem:[%s312 + $0xb8] sm:$0xff]
        %v390 = vld [vmem:[%s312 + $0xc0] sm:$0xff]
        %v391 = vld [vmem:[%s312 + $0xc8] sm:$0xff]
        %v392 = vld [vmem:[%s312 + $0xd0] sm:$0xff]
        %v393 = vld [vmem:[%s312 + $0xd8] sm:$0xff]
        %v394 = vld [vmem:[%s312 + $0xe0] sm:$0xff]
        %v395 = vld [vmem:[%s312 + $0xe8] sm:$0xff]
        %v396 = vld [vmem:[%s312 + $0xf0] sm:$0xff]
        %v397 = vld [vmem:[%s312 + $0xf8] sm:$0xff]
        %v398 = vld [vmem:[%s312 + $0x100] sm:$0xff]
        %v399 = vld [vmem:[%s312 + $0x108] sm:$0xff]
        %v400 = vld [vmem:[%s312 + $0x110] sm:$0xff]
        %v401 = vld [vmem:[%s312 + $0x118] sm:$0xff]
        %v402 = vld [vmem:[%s312 + $0x120] sm:$0xff]
        %v403 = vld [vmem:[%s312 + $0x128] sm:$0xff]
        %v404 = vld [vmem:[%s312 + $0x130] sm:$0xff]
        %v405 = vld [vmem:[%s312 + $0x138] sm:$0xff]
        %v406 = vld [vmem:[%s312 + $0x140] sm:$0xff]
        %v407 = vld [vmem:[%s312 + $0x148] sm:$0xff]
        %v408 = vld [vmem:[%s312 + $0x150] sm:$0xff]
        %v409 = vld [vmem:[%s312 + $0x158] sm:$0xff]
        %v410 = vld [vmem:[%s312 + $0x160] sm:$0xff]
        %v411 = vld [vmem:[%s312 + $0x168] sm:$0xff]
        %v412 = vld [vmem:[%s312 + $0x170] sm:$0xff]
        %v413 = vld [vmem:[%s312 + $0x178] sm:$0xff]
        %v414 = vld [vmem:[%s312 + $0x180] sm:$0xff]
        %v415 = vld [vmem:[%s312 + $0x188] sm:$0xff]
        %v416 = vld [vmem:[%s312 + $0x190] sm:$0xff]
        %v417 = vld [vmem:[%s312 + $0x198] sm:$0xff]
        %v418 = vld [vmem:[%s312 + $0x1a0] sm:$0xff]
        %v419 = vld [vmem:[%s312 + $0x1a8] sm:$0xff]
        %v420 = vld [vmem:[%s312 + $0x1b0] sm:$0xff]
        %v421 = vld [vmem:[%s312 + $0x1b8] sm:$0xff]
        %v422 = vld [vmem:[%s312 + $0x1c0] sm:$0xff]
        %v423 = vld [vmem:[%s312 + $0x1c8] sm:$0xff]
        %v424 = vld [vmem:[%s312 + $0x1d0] sm:$0xff]
        %v425 = vld [vmem:[%s312 + $0x1d8] sm:$0xff]
        %v426 = vld [vmem:[%s312 + $0x1e0] sm:$0xff]
        %v427 = vld [vmem:[%s312 + $0x1e8] sm:$0xff]
        %v428 = vld [vmem:[%s312 + $0x1f0] sm:$0xff]
        %v429 = vld [vmem:[%s312 + $0x1f8] sm:$0xff]
        %vm430 = vcmp.ne.f32.partialorder %v366, %v366
        %vm431 = vcmp.ne.f32.partialorder %v367, %v367
        %vm432 = vcmp.ne.f32.partialorder %v368, %v368
        %vm433 = vcmp.ne.f32.partialorder %v369, %v369
        %vm434 = vcmp.ne.f32.partialorder %v370, %v370
        %vm435 = vcmp.ne.f32.partialorder %v371, %v371
        %vm436 = vcmp.ne.f32.partialorder %v372, %v372
        %vm437 = vcmp.ne.f32.partialorder %v373, %v373
        %vm438 = vcmp.ne.f32.partialorder %v374, %v374
        %vm439 = vcmp.ne.f32.partialorder %v375, %v375
        %vm440 = vcmp.ne.f32.partialorder %v376, %v376
        %vm441 = vcmp.ne.f32.partialorder %v377, %v377
        %vm442 = vcmp.ne.f32.partialorder %v378, %v378
        %vm443 = vcmp.ne.f32.partialorder %v379, %v379
        %vm444 = vcmp.ne.f32.partialorder %v380, %v380
        %vm445 = vcmp.ne.f32.partialorder %v381, %v381
        %vm446 = vcmp.ne.f32.partialorder %v382, %v382
        %vm447 = vcmp.ne.f32.partialorder %v383, %v383
        %vm448 = vcmp.ne.f32.partialorder %v384, %v384
        %vm449 = vcmp.ne.f32.partialorder %v385, %v385
        %vm450 = vcmp.ne.f32.partialorder %v386, %v386
        %vm451 = vcmp.ne.f32.partialorder %v387, %v387
        %vm452 = vcmp.ne.f32.partialorder %v388, %v388
        %vm453 = vcmp.ne.f32.partialorder %v389, %v389
        %vm454 = vcmp.ne.f32.partialorder %v390, %v390
        %vm455 = vcmp.ne.f32.partialorder %v391, %v391
        %vm456 = vcmp.ne.f32.partialorder %v392, %v392
        %vm457 = vcmp.ne.f32.partialorder %v393, %v393
        %vm458 = vcmp.ne.f32.partialorder %v394, %v394
        %vm459 = vcmp.ne.f32.partialorder %v395, %v395
        %vm460 = vcmp.ne.f32.partialorder %v396, %v396
        %vm461 = vcmp.ne.f32.partialorder %v397, %v397
        %vm462 = vcmp.ne.f32.partialorder %v398, %v398
        %vm463 = vcmp.ne.f32.partialorder %v399, %v399
        %vm464 = vcmp.ne.f32.partialorder %v400, %v400
        %vm465 = vcmp.ne.f32.partialorder %v401, %v401
        %vm466 = vcmp.ne.f32.partialorder %v402, %v402
        %vm467 = vcmp.ne.f32.partialorder %v403, %v403
        %vm468 = vcmp.ne.f32.partialorder %v404, %v404
        %vm469 = vcmp.ne.f32.partialorder %v405, %v405
        %vm470 = vcmp.ne.f32.partialorder %v406, %v406
        %vm471 = vcmp.ne.f32.partialorder %v407, %v407
        %vm472 = vcmp.ne.f32.partialorder %v408, %v408
        %vm473 = vcmp.ne.f32.partialorder %v409, %v409
        %vm474 = vcmp.ne.f32.partialorder %v410, %v410
        %vm475 = vcmp.ne.f32.partialorder %v411, %v411
        %vm476 = vcmp.ne.f32.partialorder %v412, %v412
        %vm477 = vcmp.ne.f32.partialorder %v413, %v413
        %vm478 = vcmp.ne.f32.partialorder %v414, %v414
        %vm479 = vcmp.ne.f32.partialorder %v415, %v415
        %vm480 = vcmp.ne.f32.partialorder %v416, %v416
        %vm481 = vcmp.ne.f32.partialorder %v417, %v417
        %vm482 = vcmp.ne.f32.partialorder %v418, %v418
        %vm483 = vcmp.ne.f32.partialorder %v419, %v419
        %vm484 = vcmp.ne.f32.partialorder %v420, %v420
        %vm485 = vcmp.ne.f32.partialorder %v421, %v421
        %vm486 = vcmp.ne.f32.partialorder %v422, %v422
        %vm487 = vcmp.ne.f32.partialorder %v423, %v423
        %vm488 = vcmp.ne.f32.partialorder %v424, %v424
        %vm489 = vcmp.ne.f32.partialorder %v425, %v425
        %vm490 = vcmp.ne.f32.partialorder %v426, %v426
        %vm491 = vcmp.ne.f32.partialorder %v427, %v427
        %vm492 = vcmp.ne.f32.partialorder %v428, %v428
        %vm493 = vcmp.ne.f32.partialorder %v429, %v429
        %v494 = vsel %vm430, 0.0, %v366
        %v495 = vsel %vm431, 0.0, %v367
        %v496 = vsel %vm432, 0.0, %v368
        %v497 = vsel %vm433, 0.0, %v369
        %v498 = vsel %vm434, 0.0, %v370
        %v499 = vsel %vm435, 0.0, %v371
        %v500 = vsel %vm436, 0.0, %v372
        %v501 = vsel %vm437, 0.0, %v373
        %v502 = vsel %vm438, 0.0, %v374
        %v503 = vsel %vm439, 0.0, %v375
        %v504 = vsel %vm440, 0.0, %v376
        %v505 = vsel %vm441, 0.0, %v377
        %v506 = vsel %vm442, 0.0, %v378
        %v507 = vsel %vm443, 0.0, %v379
        %v508 = vsel %vm444, 0.0, %v380
        %v509 = vsel %vm445, 0.0, %v381
        %v510 = vsel %vm446, 0.0, %v382
        %v511 = vsel %vm447, 0.0, %v383
        %v512 = vsel %vm448, 0.0, %v384
        %v513 = vsel %vm449, 0.0, %v385
        %v514 = vsel %vm450, 0.0, %v386
        %v515 = vsel %vm451, 0.0, %v387
        %v516 = vsel %vm452, 0.0, %v388
        %v517 = vsel %vm453, 0.0, %v389
        %v518 = vsel %vm454, 0.0, %v390
        %v519 = vsel %vm455, 0.0, %v391
        %v520 = vsel %vm456, 0.0, %v392
        %v521 = vsel %vm457, 0.0, %v393
        %v522 = vsel %vm458, 0.0, %v394
        %v523 = vsel %vm459, 0.0, %v395
        %v524 = vsel %vm460, 0.0, %v396
        %v525 = vsel %vm461, 0.0, %v397
        %v526 = vsel %vm462, 0.0, %v398
        %v527 = vsel %vm463, 0.0, %v399
        %v528 = vsel %vm464, 0.0, %v400
        %v529 = vsel %vm465, 0.0, %v401
        %v530 = vsel %vm466, 0.0, %v402
        %v531 = vsel %vm467, 0.0, %v403
        %v532 = vsel %vm468, 0.0, %v404
        %v533 = vsel %vm469, 0.0, %v405
        %v534 = vsel %vm470, 0.0, %v406
        %v535 = vsel %vm471, 0.0, %v407
        %v536 = vsel %vm472, 0.0, %v408
        %v537 = vsel %vm473, 0.0, %v409
        %v538 = vsel %vm474, 0.0, %v410
        %v539 = vsel %vm475, 0.0, %v411
        %v540 = vsel %vm476, 0.0, %v412
        %v541 = vsel %vm477, 0.0, %v413
        %v542 = vsel %vm478, 0.0, %v414
        %v543 = vsel %vm479, 0.0, %v415
        %v544 = vsel %vm480, 0.0, %v416
        %v545 = vsel %vm481, 0.0, %v417
        %v546 = vsel %vm482, 0.0, %v418
        %v547 = vsel %vm483, 0.0, %v419
        %v548 = vsel %vm484, 0.0, %v420
        %v549 = vsel %vm485, 0.0, %v421
        %v550 = vsel %vm486, 0.0, %v422
        %v551 = vsel %vm487, 0.0, %v423
        %v552 = vsel %vm488, 0.0, %v424
        %v553 = vsel %vm489, 0.0, %v425
        %v554 = vsel %vm490, 0.0, %v426
        %v555 = vsel %vm491, 0.0, %v427
        %v556 = vsel %vm492, 0.0, %v428
        %v557 = vsel %vm493, 0.0, %v429
        %v558 = vld [vmem:[#allocation5] sm:$0xff]
        %v559 = vld [vmem:[#allocation5 + $0x8] sm:$0xff]
        %v560 = vld [vmem:[#allocation5 + $0x10] sm:$0xff]
        %v561 = vld [vmem:[#allocation5 + $0x18] sm:$0xff]
        %v562 = vld [vmem:[#allocation5 + $0x20] sm:$0xff]
        %v563 = vld [vmem:[#allocation5 + $0x28] sm:$0xff]
        %v564 = vld [vmem:[#allocation5 + $0x30] sm:$0xff]
        %v565 = vld [vmem:[#allocation5 + $0x38] sm:$0xff]
        %v566 = vld [vmem:[#allocation5 + $0x40] sm:$0xff]
        %v567 = vld [vmem:[#allocation5 + $0x48] sm:$0xff]
        %v568 = vld [vmem:[#allocation5 + $0x50] sm:$0xff]
        %v569 = vld [vmem:[#allocation5 + $0x58] sm:$0xff]
        %v570 = vld [vmem:[#allocation5 + $0x60] sm:$0xff]
        %v571 = vld [vmem:[#allocation5 + $0x68] sm:$0xff]
        %v572 = vld [vmem:[#allocation5 + $0x70] sm:$0xff]
        %v573 = vld [vmem:[#allocation5 + $0x78] sm:$0xff]
        %v574 = vld [vmem:[#allocation5 + $0x80] sm:$0xff]
        %v575 = vld [vmem:[#allocation5 + $0x88] sm:$0xff]
        %v576 = vld [vmem:[#allocation5 + $0x90] sm:$0xff]
        %v577 = vld [vmem:[#allocation5 + $0x98] sm:$0xff]
        %v578 = vld [vmem:[#allocation5 + $0xa0] sm:$0xff]
        %v579 = vld [vmem:[#allocation5 + $0xa8] sm:$0xff]
        %v580 = vld [vmem:[#allocation5 + $0xb0] sm:$0xff]
        %v581 = vld [vmem:[#allocation5 + $0xb8] sm:$0xff]
        %v582 = vld [vmem:[#allocation5 + $0xc0] sm:$0xff]
        %v583 = vld [vmem:[#allocation5 + $0xc8] sm:$0xff]
        %v584 = vld [vmem:[#allocation5 + $0xd0] sm:$0xff]
        %v585 = vld [vmem:[#allocation5 + $0xd8] sm:$0xff]
        %v586 = vld [vmem:[#allocation5 + $0xe0] sm:$0xff]
        %v587 = vld [vmem:[#allocation5 + $0xe8] sm:$0xff]
        %v588 = vld [vmem:[#allocation5 + $0xf0] sm:$0xff]
        %v589 = vld [vmem:[#allocation5 + $0xf8] sm:$0xff]
        %v590 = vld [vmem:[%s2] sm:$0x1]
        %v592 = vperm.slane %v590, 0
        %594 = vmatpush.msra.mxu0 %v573
        %595 = vmatpush.msra.mxu0 %v572
        %596 = vmatpush.msra.mxu0 %v571
        %597 = vmatpush.msra.mxu0 %v570
        %598 = vmatpush.msra.mxu0 %v569
        %599 = vmatpush.msra.mxu0 %v568
        %600 = vmatpush.msra.mxu0 %v567
        %601 = vmatpush.msra.mxu0 %v566
        %602 = vmatpush.msra.mxu0 %v565
        %603 = vmatpush.msra.mxu0 %v564
        %604 = vmatpush.msra.mxu0 %v563
        %605 = vmatpush.msra.mxu0 %v562
        %606 = vmatpush.msra.mxu0 %v561
        %607 = vmatpush.msra.mxu0 %v560
        %608 = vmatpush.msra.mxu0 %v559
        %609 = vmatpush.msra.mxu0 %v558
        %610 = vmatmul.f32.gmra.mxu0 %v494
        %v611 = vpop.f32.mrf.mxu0
        %v612 = vadd.f32 %v592, %v611
        %613 = vmatmul.f32.gmra.mxu0 %v496
        %v614 = vpop.f32.mrf.mxu0
        %v615 = vadd.f32 %v592, %v614
        %616 = vmatmul.f32.gmra.mxu0 %v498
        %v617 = vpop.f32.mrf.mxu0
        %v618 = vadd.f32 %v592, %v617
        %619 = vmatmul.f32.gmra.mxu0 %v500
        %v620 = vpop.f32.mrf.mxu0
        %v621 = vadd.f32 %v592, %v620
        %622 = vmatmul.f32.gmra.mxu0 %v502
        %v623 = vpop.f32.mrf.mxu0
        %v624 = vadd.f32 %v592, %v623
        %625 = vmatmul.f32.gmra.mxu0 %v504
        %v626 = vpop.f32.mrf.mxu0
        %v627 = vadd.f32 %v592, %v626
        %628 = vmatmul.f32.gmra.mxu0 %v506
        %v629 = vpop.f32.mrf.mxu0
        %v630 = vadd.f32 %v592, %v629
        %631 = vmatmul.f32.gmra.mxu0 %v508
        %v632 = vpop.f32.mrf.mxu0
        %v633 = vadd.f32 %v592, %v632
        %634 = vmatmul.f32.gmra.mxu0 %v510
        %v635 = vpop.f32.mrf.mxu0
        %v636 = vadd.f32 %v592, %v635
        %637 = vmatmul.f32.gmra.mxu0 %v512
        %v638 = vpop.f32.mrf.mxu0
        %v639 = vadd.f32 %v592, %v638
        %640 = vmatmul.f32.gmra.mxu0 %v514
        %v641 = vpop.f32.mrf.mxu0
        %v642 = vadd.f32 %v592, %v641
        %643 = vmatmul.f32.gmra.mxu0 %v516
        %v644 = vpop.f32.mrf.mxu0
        %v645 = vadd.f32 %v592, %v644
        %646 = vmatmul.f32.gmra.mxu0 %v518
        %v647 = vpop.f32.mrf.mxu0
        %v648 = vadd.f32 %v592, %v647
        %649 = vmatmul.f32.gmra.mxu0 %v520
        %v650 = vpop.f32.mrf.mxu0
        %v651 = vadd.f32 %v592, %v650
        %652 = vmatmul.f32.gmra.mxu0 %v522
        %v653 = vpop.f32.mrf.mxu0
        %v654 = vadd.f32 %v592, %v653
        %655 = vmatmul.f32.gmra.mxu0 %v524
        %v656 = vpop.f32.mrf.mxu0
        %v657 = vadd.f32 %v592, %v656
        %658 = vmatmul.f32.gmra.mxu0 %v526
        %v659 = vpop.f32.mrf.mxu0
        %v660 = vadd.f32 %v592, %v659
        %661 = vmatmul.f32.gmra.mxu0 %v528
        %v662 = vpop.f32.mrf.mxu0
        %v663 = vadd.f32 %v592, %v662
        %664 = vmatmul.f32.gmra.mxu0 %v530
        %v665 = vpop.f32.mrf.mxu0
        %v666 = vadd.f32 %v592, %v665
        %667 = vmatmul.f32.gmra.mxu0 %v532
        %v668 = vpop.f32.mrf.mxu0
        %v669 = vadd.f32 %v592, %v668
        %670 = vmatmul.f32.gmra.mxu0 %v534
        %v671 = vpop.f32.mrf.mxu0
        %v672 = vadd.f32 %v592, %v671
        %673 = vmatmul.f32.gmra.mxu0 %v536
        %v674 = vpop.f32.mrf.mxu0
        %v675 = vadd.f32 %v592, %v674
        %676 = vmatmul.f32.gmra.mxu0 %v538
        %v677 = vpop.f32.mrf.mxu0
        %v678 = vadd.f32 %v592, %v677
        %679 = vmatmul.f32.gmra.mxu0 %v540
        %v680 = vpop.f32.mrf.mxu0
        %v681 = vadd.f32 %v592, %v680
        %682 = vmatmul.f32.gmra.mxu0 %v542
        %v683 = vpop.f32.mrf.mxu0
        %v684 = vadd.f32 %v592, %v683
        %685 = vmatmul.f32.gmra.mxu0 %v544
        %v686 = vpop.f32.mrf.mxu0
        %v687 = vadd.f32 %v592, %v686
        %688 = vmatmul.f32.gmra.mxu0 %v546
        %v689 = vpop.f32.mrf.mxu0
        %v690 = vadd.f32 %v592, %v689
        %691 = vmatmul.f32.gmra.mxu0 %v548
        %v692 = vpop.f32.mrf.mxu0
        %v693 = vadd.f32 %v592, %v692
        %694 = vmatmul.f32.gmra.mxu0 %v550
        %v695 = vpop.f32.mrf.mxu0
        %v696 = vadd.f32 %v592, %v695
        %697 = vmatmul.f32.gmra.mxu0 %v552
        %v698 = vpop.f32.mrf.mxu0
        %v699 = vadd.f32 %v592, %v698
        %700 = vmatmul.f32.gmra.mxu0 %v554
        %v701 = vpop.f32.mrf.mxu0
        %v702 = vadd.f32 %v592, %v701
        %703 = vmatmul.f32.gmra.mxu0 %v556
        %v704 = vpop.f32.mrf.mxu0
        %v705 = vadd.f32 %v592, %v704
        %706 = vdwg.mxu0
        %707 = vmatpush.msra.mxu0 %v589
        %708 = vmatpush.msra.mxu0 %v588
        %709 = vmatpush.msra.mxu0 %v587
        %710 = vmatpush.msra.mxu0 %v586
        %711 = vmatpush.msra.mxu0 %v585
        %712 = vmatpush.msra.mxu0 %v584
        %713 = vmatpush.msra.mxu0 %v583
        %714 = vmatpush.msra.mxu0 %v582
        %715 = vmatpush.msra.mxu0 %v581
        %716 = vmatpush.msra.mxu0 %v580
        %717 = vmatpush.msra.mxu0 %v579
        %718 = vmatpush.msra.mxu0 %v578
        %719 = vmatpush.msra.mxu0 %v577
        %720 = vmatpush.msra.mxu0 %v576
        %721 = vmatpush.msra.mxu0 %v575
        %722 = vmatpush.msra.mxu0 %v574
        %723 = vmatmul.f32.gmra.mxu0 %v495
        %v724 = vpop.f32.mrf.mxu0
        %v725 = vadd.f32 %v612, %v724
        %726 = vmatmul.f32.gmra.mxu0 %v497
        %v727 = vpop.f32.mrf.mxu0
        %v728 = vadd.f32 %v615, %v727
        %729 = vmatmul.f32.gmra.mxu0 %v499
        %v730 = vpop.f32.mrf.mxu0
        %v731 = vadd.f32 %v618, %v730
        %732 = vmatmul.f32.gmra.mxu0 %v501
        %v733 = vpop.f32.mrf.mxu0
        %v734 = vadd.f32 %v621, %v733
        %735 = vmatmul.f32.gmra.mxu0 %v503
        %v736 = vpop.f32.mrf.mxu0
        %v737 = vadd.f32 %v624, %v736
        %738 = vmatmul.f32.gmra.mxu0 %v505
        %v739 = vpop.f32.mrf.mxu0
        %v740 = vadd.f32 %v627, %v739
        %741 = vmatmul.f32.gmra.mxu0 %v507
        %v742 = vpop.f32.mrf.mxu0
        %v743 = vadd.f32 %v630, %v742
        %744 = vmatmul.f32.gmra.mxu0 %v509
        %v745 = vpop.f32.mrf.mxu0
        %v746 = vadd.f32 %v633, %v745
        %747 = vmatmul.f32.gmra.mxu0 %v511
        %v748 = vpop.f32.mrf.mxu0
        %v749 = vadd.f32 %v636, %v748
        %750 = vmatmul.f32.gmra.mxu0 %v513
        %v751 = vpop.f32.mrf.mxu0
        %v752 = vadd.f32 %v639, %v751
        %753 = vmatmul.f32.gmra.mxu0 %v515
        %v754 = vpop.f32.mrf.mxu0
        %v755 = vadd.f32 %v642, %v754
        %756 = vmatmul.f32.gmra.mxu0 %v517
        %v757 = vpop.f32.mrf.mxu0
        %v758 = vadd.f32 %v645, %v757
        %759 = vmatmul.f32.gmra.mxu0 %v519
        %v760 = vpop.f32.mrf.mxu0
        %v761 = vadd.f32 %v648, %v760
        %762 = vmatmul.f32.gmra.mxu0 %v521
        %v763 = vpop.f32.mrf.mxu0
        %v764 = vadd.f32 %v651, %v763
        %765 = vmatmul.f32.gmra.mxu0 %v523
        %v766 = vpop.f32.mrf.mxu0
        %v767 = vadd.f32 %v654, %v766
        %768 = vmatmul.f32.gmra.mxu0 %v525
        %v769 = vpop.f32.mrf.mxu0
        %v770 = vadd.f32 %v657, %v769
        %771 = vmatmul.f32.gmra.mxu0 %v527
        %v772 = vpop.f32.mrf.mxu0
        %v773 = vadd.f32 %v660, %v772
        %774 = vmatmul.f32.gmra.mxu0 %v529
        %v775 = vpop.f32.mrf.mxu0
        %v776 = vadd.f32 %v663, %v775
        %777 = vmatmul.f32.gmra.mxu0 %v531
        %v778 = vpop.f32.mrf.mxu0
        %v779 = vadd.f32 %v666, %v778
        %780 = vmatmul.f32.gmra.mxu0 %v533
        %v781 = vpop.f32.mrf.mxu0
        %v782 = vadd.f32 %v669, %v781
        %783 = vmatmul.f32.gmra.mxu0 %v535
        %v784 = vpop.f32.mrf.mxu0
        %v785 = vadd.f32 %v672, %v784
        %786 = vmatmul.f32.gmra.mxu0 %v537
        %v787 = vpop.f32.mrf.mxu0
        %v788 = vadd.f32 %v675, %v787
        %789 = vmatmul.f32.gmra.mxu0 %v539
        %v790 = vpop.f32.mrf.mxu0
        %v791 = vadd.f32 %v678, %v790
        %792 = vmatmul.f32.gmra.mxu0 %v541
        %v793 = vpop.f32.mrf.mxu0
        %v794 = vadd.f32 %v681, %v793
        %795 = vmatmul.f32.gmra.mxu0 %v543
        %v796 = vpop.f32.mrf.mxu0
        %v797 = vadd.f32 %v684, %v796
        %798 = vmatmul.f32.gmra.mxu0 %v545
        %v799 = vpop.f32.mrf.mxu0
        %v800 = vadd.f32 %v687, %v799
        %801 = vmatmul.f32.gmra.mxu0 %v547
        %v802 = vpop.f32.mrf.mxu0
        %v803 = vadd.f32 %v690, %v802
        %804 = vmatmul.f32.gmra.mxu0 %v549
        %v805 = vpop.f32.mrf.mxu0
        %v806 = vadd.f32 %v693, %v805
        %807 = vmatmul.f32.gmra.mxu0 %v551
        %v808 = vpop.f32.mrf.mxu0
        %v809 = vadd.f32 %v696, %v808
        %810 = vmatmul.f32.gmra.mxu0 %v553
        %v811 = vpop.f32.mrf.mxu0
        %v812 = vadd.f32 %v699, %v811
        %813 = vmatmul.f32.gmra.mxu0 %v555
        %v814 = vpop.f32.mrf.mxu0
        %v815 = vadd.f32 %v702, %v814
        %816 = vmatmul.f32.gmra.mxu0 %v557
        %v817 = vpop.f32.mrf.mxu0
        %v818 = vadd.f32 %v705, %v817
        %819 = vdwg.mxu0
        %v820 = vtanh.pop %v725
        %v821 = vtanh.pop %v728
        %v822 = vtanh.pop %v731
        %v823 = vtanh.pop %v734
        %v824 = vtanh.pop %v737
        %v825 = vtanh.pop %v740
        %v826 = vtanh.pop %v743
        %v827 = vtanh.pop %v746
        %v828 = vtanh.pop %v749
        %v829 = vtanh.pop %v752
        %v830 = vtanh.pop %v755
        %v831 = vtanh.pop %v758
        %v832 = vtanh.pop %v761
        %v833 = vtanh.pop %v764
        %v834 = vtanh.pop %v767
        %v835 = vtanh.pop %v770
        %v836 = vtanh.pop %v773
        %v837 = vtanh.pop %v776
        %v838 = vtanh.pop %v779
        %v839 = vtanh.pop %v782
        %v840 = vtanh.pop %v785
        %v841 = vtanh.pop %v788
        %v842 = vtanh.pop %v791
        %v843 = vtanh.pop %v794
        %v844 = vtanh.pop %v797
        %v845 = vtanh.pop %v800
        %v846 = vtanh.pop %v803
        %v847 = vtanh.pop %v806
        %v848 = vtanh.pop %v809
        %v849 = vtanh.pop %v812
        %v850 = vtanh.pop %v815
        %v851 = vtanh.pop %v818
        %v852 = vld [vmem:[#allocation7] sm:$0xff]
        %v853 = vld [vmem:[#allocation7 + $0x8] sm:$0xff]
        %v854 = vld [vmem:[#allocation7 + $0x10] sm:$0xff]
        %v855 = vld [vmem:[#allocation7 + $0x18] sm:$0xff]
        %v856 = vld [vmem:[#allocation7 + $0x20] sm:$0xff]
        %v857 = vld [vmem:[#allocation7 + $0x28] sm:$0xff]
        %v858 = vld [vmem:[#allocation7 + $0x30] sm:$0xff]
        %v859 = vld [vmem:[#allocation7 + $0x38] sm:$0xff]
        %v860 = vld [vmem:[#allocation7 + $0x40] sm:$0xff]
        %v861 = vld [vmem:[#allocation7 + $0x48] sm:$0xff]
        %v862 = vld [vmem:[#allocation7 + $0x50] sm:$0xff]
        %v863 = vld [vmem:[#allocation7 + $0x58] sm:$0xff]
        %v864 = vld [vmem:[#allocation7 + $0x60] sm:$0xff]
        %v865 = vld [vmem:[#allocation7 + $0x68] sm:$0xff]
        %v866 = vld [vmem:[#allocation7 + $0x70] sm:$0xff]
        %v867 = vld [vmem:[#allocation7 + $0x78] sm:$0xff]
        %v868 = vld [vmem:[#allocation8] sm:$0x1]
        %v870 = vperm.slane %v868, 0
        %872 = vmatpush.msra.mxu0 %v867
        %873 = vmatpush.msra.mxu0 %v866
        %874 = vmatpush.msra.mxu0 %v865
        %875 = vmatpush.msra.mxu0 %v864
        %876 = vmatpush.msra.mxu0 %v863
        %877 = vmatpush.msra.mxu0 %v862
        %878 = vmatpush.msra.mxu0 %v861
        %879 = vmatpush.msra.mxu0 %v860
        %880 = vmatpush.msra.mxu0 %v859
        %881 = vmatpush.msra.mxu0 %v858
        %882 = vmatpush.msra.mxu0 %v857
        %883 = vmatpush.msra.mxu0 %v856
        %884 = vmatpush.msra.mxu0 %v855
        %885 = vmatpush.msra.mxu0 %v854
        %886 = vmatpush.msra.mxu0 %v853
        %887 = vmatpush.msra.mxu0 %v852
        %888 = vmatmul.f32.gmra.mxu0 %v820
        %v889 = vpop.f32.mrf.mxu0
        %v890 = vadd.f32 %v870, %v889
        %891 = vmatmul.f32.gmra.mxu0 %v821
        %v892 = vpop.f32.mrf.mxu0
        %v893 = vadd.f32 %v870, %v892
        %894 = vmatmul.f32.gmra.mxu0 %v822
        %v895 = vpop.f32.mrf.mxu0
        %v896 = vadd.f32 %v870, %v895
        %897 = vmatmul.f32.gmra.mxu0 %v823
        %v898 = vpop.f32.mrf.mxu0
        %v899 = vadd.f32 %v870, %v898
        %900 = vmatmul.f32.gmra.mxu0 %v824
        %v901 = vpop.f32.mrf.mxu0
        %v902 = vadd.f32 %v870, %v901
        %903 = vmatmul.f32.gmra.mxu0 %v825
        %v904 = vpop.f32.mrf.mxu0
        %v905 = vadd.f32 %v870, %v904
        %906 = vmatmul.f32.gmra.mxu0 %v826
        %v907 = vpop.f32.mrf.mxu0
        %v908 = vadd.f32 %v870, %v907
        %909 = vmatmul.f32.gmra.mxu0 %v827
        %v910 = vpop.f32.mrf.mxu0
        %v911 = vadd.f32 %v870, %v910
        %912 = vmatmul.f32.gmra.mxu0 %v828
        %v913 = vpop.f32.mrf.mxu0
        %v914 = vadd.f32 %v870, %v913
        %915 = vmatmul.f32.gmra.mxu0 %v829
        %v916 = vpop.f32.mrf.mxu0
        %v917 = vadd.f32 %v870, %v916
        %918 = vmatmul.f32.gmra.mxu0 %v830
        %v919 = vpop.f32.mrf.mxu0
        %v920 = vadd.f32 %v870, %v919
        %921 = vmatmul.f32.gmra.mxu0 %v831
        %v922 = vpop.f32.mrf.mxu0
        %v923 = vadd.f32 %v870, %v922
        %924 = vmatmul.f32.gmra.mxu0 %v832
        %v925 = vpop.f32.mrf.mxu0
        %v926 = vadd.f32 %v870, %v925
        %927 = vmatmul.f32.gmra.mxu0 %v833
        %v928 = vpop.f32.mrf.mxu0
        %v929 = vadd.f32 %v870, %v928
        %930 = vmatmul.f32.gmra.mxu0 %v834
        %v931 = vpop.f32.mrf.mxu0
        %v932 = vadd.f32 %v870, %v931
        %933 = vmatmul.f32.gmra.mxu0 %v835
        %v934 = vpop.f32.mrf.mxu0
        %v935 = vadd.f32 %v870, %v934
        %936 = vmatmul.f32.gmra.mxu0 %v836
        %v937 = vpop.f32.mrf.mxu0
        %v938 = vadd.f32 %v870, %v937
        %939 = vmatmul.f32.gmra.mxu0 %v837
        %v940 = vpop.f32.mrf.mxu0
        %v941 = vadd.f32 %v870, %v940
        %942 = vmatmul.f32.gmra.mxu0 %v838
        %v943 = vpop.f32.mrf.mxu0
        %v944 = vadd.f32 %v870, %v943
        %945 = vmatmul.f32.gmra.mxu0 %v839
        %v946 = vpop.f32.mrf.mxu0
        %v947 = vadd.f32 %v870, %v946
        %948 = vmatmul.f32.gmra.mxu0 %v840
        %v949 = vpop.f32.mrf.mxu0
        %v950 = vadd.f32 %v870, %v949
        %951 = vmatmul.f32.gmra.mxu0 %v841
        %v952 = vpop.f32.mrf.mxu0
        %v953 = vadd.f32 %v870, %v952
        %954 = vmatmul.f32.gmra.mxu0 %v842
        %v955 = vpop.f32.mrf.mxu0
        %v956 = vadd.f32 %v870, %v955
        %957 = vmatmul.f32.gmra.mxu0 %v843
        %v958 = vpop.f32.mrf.mxu0
        %v959 = vadd.f32 %v870, %v958
        %960 = vmatmul.f32.gmra.mxu0 %v844
        %v961 = vpop.f32.mrf.mxu0
        %v962 = vadd.f32 %v870, %v961
        %963 = vmatmul.f32.gmra.mxu0 %v845
        %v964 = vpop.f32.mrf.mxu0
        %v965 = vadd.f32 %v870, %v964
        %966 = vmatmul.f32.gmra.mxu0 %v846
        %v967 = vpop.f32.mrf.mxu0
        %v968 = vadd.f32 %v870, %v967
        %969 = vmatmul.f32.gmra.mxu0 %v847
        %v970 = vpop.f32.mrf.mxu0
        %v971 = vadd.f32 %v870, %v970
        %972 = vmatmul.f32.gmra.mxu0 %v848
        %v973 = vpop.f32.mrf.mxu0
        %v974 = vadd.f32 %v870, %v973
        %975 = vmatmul.f32.gmra.mxu0 %v849
        %v976 = vpop.f32.mrf.mxu0
        %v977 = vadd.f32 %v870, %v976
        %978 = vmatmul.f32.gmra.mxu0 %v850
        %v979 = vpop.f32.mrf.mxu0
        %v980 = vadd.f32 %v870, %v979
        %981 = vmatmul.f32.gmra.mxu0 %v851
        %v982 = vpop.f32.mrf.mxu0
        %v983 = vadd.f32 %v870, %v982
        %984 = vdwg.mxu0
        %v985 = vtanh.pop %v890
        %v986 = vtanh.pop %v893
        %v987 = vtanh.pop %v896
        %v988 = vtanh.pop %v899
        %v989 = vtanh.pop %v902
        %v990 = vtanh.pop %v905
        %v991 = vtanh.pop %v908
        %v992 = vtanh.pop %v911
        %v993 = vtanh.pop %v914
        %v994 = vtanh.pop %v917
        %v995 = vtanh.pop %v920
        %v996 = vtanh.pop %v923
        %v997 = vtanh.pop %v926
        %v998 = vtanh.pop %v929
        %v999 = vtanh.pop %v932
        %v1000 = vtanh.pop %v935
        %v1001 = vtanh.pop %v938
        %v1002 = vtanh.pop %v941
        %v1003 = vtanh.pop %v944
        %v1004 = vtanh.pop %v947
        %v1005 = vtanh.pop %v950
        %v1006 = vtanh.pop %v953
        %v1007 = vtanh.pop %v956
        %v1008 = vtanh.pop %v959
        %v1009 = vtanh.pop %v962
        %v1010 = vtanh.pop %v965
        %v1011 = vtanh.pop %v968
        %v1012 = vtanh.pop %v971
        %v1013 = vtanh.pop %v974
        %v1014 = vtanh.pop %v977
        %v1015 = vtanh.pop %v980
        %v1016 = vtanh.pop %v983
        %v1017 = vld [vmem:[#allocation10] sm:$0xff]
        %v1018 = vld [vmem:[#allocation10 + $0x8] sm:$0xff]
        %v1019 = vld [vmem:[#allocation10 + $0x10] sm:$0xff]
        %v1020 = vld [vmem:[#allocation10 + $0x18] sm:$0xff]
        %v1021 = vld [vmem:[#allocation10 + $0x20] sm:$0xff]
        %v1022 = vld [vmem:[#allocation10 + $0x28] sm:$0xff]
        %v1023 = vld [vmem:[#allocation10 + $0x30] sm:$0xff]
        %v1024 = vld [vmem:[#allocation10 + $0x38] sm:$0xff]
        %v1025 = vld [vmem:[#allocation10 + $0x40] sm:$0xff]
        %v1026 = vld [vmem:[#allocation10 + $0x48] sm:$0xff]
        %v1027 = vld [vmem:[#allocation10 + $0x50] sm:$0xff]
        %v1028 = vld [vmem:[#allocation10 + $0x58] sm:$0xff]
        %v1029 = vld [vmem:[#allocation10 + $0x60] sm:$0xff]
        %v1030 = vld [vmem:[#allocation10 + $0x68] sm:$0xff]
        %v1031 = vld [vmem:[#allocation10 + $0x70] sm:$0xff]
        %v1032 = vld [vmem:[#allocation10 + $0x78] sm:$0xff]
        %v1033 = vld [vmem:[#allocation10 + $0x80] sm:$0xff]
        %v1034 = vld [vmem:[#allocation10 + $0x88] sm:$0xff]
        %v1035 = vld [vmem:[#allocation10 + $0x90] sm:$0xff]
        %v1036 = vld [vmem:[#allocation10 + $0x98] sm:$0xff]
        %v1037 = vld [vmem:[#allocation10 + $0xa0] sm:$0xff]
        %v1038 = vld [vmem:[#allocation10 + $0xa8] sm:$0xff]
        %v1039 = vld [vmem:[#allocation10 + $0xb0] sm:$0xff]
        %v1040 = vld [vmem:[#allocation10 + $0xb8] sm:$0xff]
        %v1041 = vld [vmem:[#allocation10 + $0xc0] sm:$0xff]
        %v1042 = vld [vmem:[#allocation10 + $0xc8] sm:$0xff]
        %v1043 = vld [vmem:[#allocation10 + $0xd0] sm:$0xff]
        %v1044 = vld [vmem:[#allocation10 + $0xd8] sm:$0xff]
        %v1045 = vld [vmem:[#allocation10 + $0xe0] sm:$0xff]
        %v1046 = vld [vmem:[#allocation10 + $0xe8] sm:$0xff]
        %v1047 = vld [vmem:[#allocation10 + $0xf0] sm:$0xff]
        %v1048 = vld [vmem:[#allocation10 + $0xf8] sm:$0xff]
        %v1049 = vld [vmem:[%s6] sm:$0x3]
        %v1051 = vperm.slane %v1049, 0
        %v1052 = vperm.slane %v1049, 1
        %1055 = vmatpush.msra.mxu0 %v1047
        %1056 = vmatpush.msra.mxu0 %v1045
        %1057 = vmatpush.msra.mxu0 %v1043
        %1058 = vmatpush.msra.mxu0 %v1041
        %1059 = vmatpush.msra.mxu0 %v1039
        %1060 = vmatpush.msra.mxu0 %v1037
        %1061 = vmatpush.msra.mxu0 %v1035
        %1062 = vmatpush.msra.mxu0 %v1033
        %1063 = vmatpush.msra.mxu0 %v1031
        %1064 = vmatpush.msra.mxu0 %v1029
        %1065 = vmatpush.msra.mxu0 %v1027
        %1066 = vmatpush.msra.mxu0 %v1025
        %1067 = vmatpush.msra.mxu0 %v1023
        %1068 = vmatpush.msra.mxu0 %v1021
        %1069 = vmatpush.msra.mxu0 %v1019
        %1070 = vmatpush.msra.mxu0 %v1017
        %1071 = vmatmul.f32.gmra.mxu0 %v985
        %v1072 = vpop.f32.mrf.mxu0
        %v1073 = vadd.f32 %v1051, %v1072
        %1074 = vmatmul.f32.gmra.mxu0 %v986
        %v1075 = vpop.f32.mrf.mxu0
        %v1076 = vadd.f32 %v1051, %v1075
        %1077 = vmatmul.f32.gmra.mxu0 %v987
        %v1078 = vpop.f32.mrf.mxu0
        %v1079 = vadd.f32 %v1051, %v1078
        %1080 = vmatmul.f32.gmra.mxu0 %v988
        %v1081 = vpop.f32.mrf.mxu0
        %v1082 = vadd.f32 %v1051, %v1081
        %1083 = vmatmul.f32.gmra.mxu0 %v989
        %v1084 = vpop.f32.mrf.mxu0
        %v1085 = vadd.f32 %v1051, %v1084
        %1086 = vmatmul.f32.gmra.mxu0 %v990
        %v1087 = vpop.f32.mrf.mxu0
        %v1088 = vadd.f32 %v1051, %v1087
        %1089 = vmatmul.f32.gmra.mxu0 %v991
        %v1090 = vpop.f32.mrf.mxu0
        %v1091 = vadd.f32 %v1051, %v1090
        %1092 = vmatmul.f32.gmra.mxu0 %v992
        %v1093 = vpop.f32.mrf.mxu0
        %v1094 = vadd.f32 %v1051, %v1093
        %1095 = vmatmul.f32.gmra.mxu0 %v993
        %v1096 = vpop.f32.mrf.mxu0
        %v1097 = vadd.f32 %v1051, %v1096
        %1098 = vmatmul.f32.gmra.mxu0 %v994
        %v1099 = vpop.f32.mrf.mxu0
        %v1100 = vadd.f32 %v1051, %v1099
        %1101 = vmatmul.f32.gmra.mxu0 %v995
        %v1102 = vpop.f32.mrf.mxu0
        %v1103 = vadd.f32 %v1051, %v1102
        %1104 = vmatmul.f32.gmra.mxu0 %v996
        %v1105 = vpop.f32.mrf.mxu0
        %v1106 = vadd.f32 %v1051, %v1105
        %1107 = vmatmul.f32.gmra.mxu0 %v997
        %v1108 = vpop.f32.mrf.mxu0
        %v1109 = vadd.f32 %v1051, %v1108
        %1110 = vmatmul.f32.gmra.mxu0 %v998
        %v1111 = vpop.f32.mrf.mxu0
        %v1112 = vadd.f32 %v1051, %v1111
        %1113 = vmatmul.f32.gmra.mxu0 %v999
        %v1114 = vpop.f32.mrf.mxu0
        %v1115 = vadd.f32 %v1051, %v1114
        %1116 = vmatmul.f32.gmra.mxu0 %v1000
        %v1117 = vpop.f32.mrf.mxu0
        %v1118 = vadd.f32 %v1051, %v1117
        %1119 = vmatmul.f32.gmra.mxu0 %v1001
        %v1120 = vpop.f32.mrf.mxu0
        %v1121 = vadd.f32 %v1051, %v1120
        %1122 = vmatmul.f32.gmra.mxu0 %v1002
        %v1123 = vpop.f32.mrf.mxu0
        %v1124 = vadd.f32 %v1051, %v1123
        %1125 = vmatmul.f32.gmra.mxu0 %v1003
        %v1126 = vpop.f32.mrf.mxu0
        %v1127 = vadd.f32 %v1051, %v1126
        %1128 = vmatmul.f32.gmra.mxu0 %v1004
        %v1129 = vpop.f32.mrf.mxu0
        %v1130 = vadd.f32 %v1051, %v1129
        %1131 = vmatmul.f32.gmra.mxu0 %v1005
        %v1132 = vpop.f32.mrf.mxu0
        %v1133 = vadd.f32 %v1051, %v1132
        %1134 = vmatmul.f32.gmra.mxu0 %v1006
        %v1135 = vpop.f32.mrf.mxu0
        %v1136 = vadd.f32 %v1051, %v1135
        %1137 = vmatmul.f32.gmra.mxu0 %v1007
        %v1138 = vpop.f32.mrf.mxu0
        %v1139 = vadd.f32 %v1051, %v1138
        %1140 = vmatmul.f32.gmra.mxu0 %v1008
        %v1141 = vpop.f32.mrf.mxu0
        %v1142 = vadd.f32 %v1051, %v1141
        %1143 = vmatmul.f32.gmra.mxu0 %v1009
        %v1144 = vpop.f32.mrf.mxu0
        %v1145 = vadd.f32 %v1051, %v1144
        %1146 = vmatmul.f32.gmra.mxu0 %v1010
        %v1147 = vpop.f32.mrf.mxu0
        %v1148 = vadd.f32 %v1051, %v1147
        %1149 = vmatmul.f32.gmra.mxu0 %v1011
        %v1150 = vpop.f32.mrf.mxu0
        %v1151 = vadd.f32 %v1051, %v1150
        %1152 = vmatmul.f32.gmra.mxu0 %v1012
        %v1153 = vpop.f32.mrf.mxu0
        %v1154 = vadd.f32 %v1051, %v1153
        %1155 = vmatmul.f32.gmra.mxu0 %v1013
        %v1156 = vpop.f32.mrf.mxu0
        %v1157 = vadd.f32 %v1051, %v1156
        %1158 = vmatmul.f32.gmra.mxu0 %v1014
        %v1159 = vpop.f32.mrf.mxu0
        %v1160 = vadd.f32 %v1051, %v1159
        %1161 = vmatmul.f32.gmra.mxu0 %v1015
        %v1162 = vpop.f32.mrf.mxu0
        %v1163 = vadd.f32 %v1051, %v1162
        %1164 = vmatmul.f32.gmra.mxu0 %v1016
        %v1165 = vpop.f32.mrf.mxu0
        %v1166 = vadd.f32 %v1051, %v1165
        %1167 = vdwg.mxu0
        %1168 = vmatpush.msra.mxu0 %v1048
        %1169 = vmatpush.msra.mxu0 %v1046
        %1170 = vmatpush.msra.mxu0 %v1044
        %1171 = vmatpush.msra.mxu0 %v1042
        %1172 = vmatpush.msra.mxu0 %v1040
        %1173 = vmatpush.msra.mxu0 %v1038
        %1174 = vmatpush.msra.mxu0 %v1036
        %1175 = vmatpush.msra.mxu0 %v1034
        %1176 = vmatpush.msra.mxu0 %v1032
        %1177 = vmatpush.msra.mxu0 %v1030
        %1178 = vmatpush.msra.mxu0 %v1028
        %1179 = vmatpush.msra.mxu0 %v1026
        %1180 = vmatpush.msra.mxu0 %v1024
        %1181 = vmatpush.msra.mxu0 %v1022
        %1182 = vmatpush.msra.mxu0 %v1020
        %1183 = vmatpush.msra.mxu0 %v1018
        %1184 = vmatmul.f32.gmra.mxu0 %v985
        %v1185 = vpop.f32.mrf.mxu0
        %v1186 = vadd.f32 %v1052, %v1185
        %1187 = vmatmul.f32.gmra.mxu0 %v986
        %v1188 = vpop.f32.mrf.mxu0
        %v1189 = vadd.f32 %v1052, %v1188
        %1190 = vmatmul.f32.gmra.mxu0 %v987
        %v1191 = vpop.f32.mrf.mxu0
        %v1192 = vadd.f32 %v1052, %v1191
        %1193 = vmatmul.f32.gmra.mxu0 %v988
        %v1194 = vpop.f32.mrf.mxu0
        %v1195 = vadd.f32 %v1052, %v1194
        %1196 = vmatmul.f32.gmra.mxu0 %v989
        %v1197 = vpop.f32.mrf.mxu0
        %v1198 = vadd.f32 %v1052, %v1197
        %1199 = vmatmul.f32.gmra.mxu0 %v990
        %v1200 = vpop.f32.mrf.mxu0
        %v1201 = vadd.f32 %v1052, %v1200
        %1202 = vmatmul.f32.gmra.mxu0 %v991
        %v1203 = vpop.f32.mrf.mxu0
        %v1204 = vadd.f32 %v1052, %v1203
        %1205 = vmatmul.f32.gmra.mxu0 %v992
        %v1206 = vpop.f32.mrf.mxu0
        %v1207 = vadd.f32 %v1052, %v1206
        %1208 = vmatmul.f32.gmra.mxu0 %v993
        %v1209 = vpop.f32.mrf.mxu0
        %v1210 = vadd.f32 %v1052, %v1209
        %1211 = vmatmul.f32.gmra.mxu0 %v994
        %v1212 = vpop.f32.mrf.mxu0
        %v1213 = vadd.f32 %v1052, %v1212
        %1214 = vmatmul.f32.gmra.mxu0 %v995
        %v1215 = vpop.f32.mrf.mxu0
        %v1216 = vadd.f32 %v1052, %v1215
        %1217 = vmatmul.f32.gmra.mxu0 %v996
        %v1218 = vpop.f32.mrf.mxu0
        %v1219 = vadd.f32 %v1052, %v1218
        %1220 = vmatmul.f32.gmra.mxu0 %v997
        %v1221 = vpop.f32.mrf.mxu0
        %v1222 = vadd.f32 %v1052, %v1221
        %1223 = vmatmul.f32.gmra.mxu0 %v998
        %v1224 = vpop.f32.mrf.mxu0
        %v1225 = vadd.f32 %v1052, %v1224
        %1226 = vmatmul.f32.gmra.mxu0 %v999
        %v1227 = vpop.f32.mrf.mxu0
        %v1228 = vadd.f32 %v1052, %v1227
        %1229 = vmatmul.f32.gmra.mxu0 %v1000
        %v1230 = vpop.f32.mrf.mxu0
        %v1231 = vadd.f32 %v1052, %v1230
        %1232 = vmatmul.f32.gmra.mxu0 %v1001
        %v1233 = vpop.f32.mrf.mxu0
        %v1234 = vadd.f32 %v1052, %v1233
        %1235 = vmatmul.f32.gmra.mxu0 %v1002
        %v1236 = vpop.f32.mrf.mxu0
        %v1237 = vadd.f32 %v1052, %v1236
        %1238 = vmatmul.f32.gmra.mxu0 %v1003
        %v1239 = vpop.f32.mrf.mxu0
        %v1240 = vadd.f32 %v1052, %v1239
        %1241 = vmatmul.f32.gmra.mxu0 %v1004
        %v1242 = vpop.f32.mrf.mxu0
        %v1243 = vadd.f32 %v1052, %v1242
        %1244 = vmatmul.f32.gmra.mxu0 %v1005
        %v1245 = vpop.f32.mrf.mxu0
        %v1246 = vadd.f32 %v1052, %v1245
        %1247 = vmatmul.f32.gmra.mxu0 %v1006
        %v1248 = vpop.f32.mrf.mxu0
        %v1249 = vadd.f32 %v1052, %v1248
        %1250 = vmatmul.f32.gmra.mxu0 %v1007
        %v1251 = vpop.f32.mrf.mxu0
        %v1252 = vadd.f32 %v1052, %v1251
        %1253 = vmatmul.f32.gmra.mxu0 %v1008
        %v1254 = vpop.f32.mrf.mxu0
        %v1255 = vadd.f32 %v1052, %v1254
        %1256 = vmatmul.f32.gmra.mxu0 %v1009
        %v1257 = vpop.f32.mrf.mxu0
        %v1258 = vadd.f32 %v1052, %v1257
        %1259 = vmatmul.f32.gmra.mxu0 %v1010
        %v1260 = vpop.f32.mrf.mxu0
        %v1261 = vadd.f32 %v1052, %v1260
        %1262 = vmatmul.f32.gmra.mxu0 %v1011
        %v1263 = vpop.f32.mrf.mxu0
        %v1264 = vadd.f32 %v1052, %v1263
        %1265 = vmatmul.f32.gmra.mxu0 %v1012
        %v1266 = vpop.f32.mrf.mxu0
        %v1267 = vadd.f32 %v1052, %v1266
        %1268 = vmatmul.f32.gmra.mxu0 %v1013
        %v1269 = vpop.f32.mrf.mxu0
        %v1270 = vadd.f32 %v1052, %v1269
        %1271 = vmatmul.f32.gmra.mxu0 %v1014
        %v1272 = vpop.f32.mrf.mxu0
        %v1273 = vadd.f32 %v1052, %v1272
        %1274 = vmatmul.f32.gmra.mxu0 %v1015
        %v1275 = vpop.f32.mrf.mxu0
        %v1276 = vadd.f32 %v1052, %v1275
        %1277 = vmatmul.f32.gmra.mxu0 %v1016
        %v1278 = vpop.f32.mrf.mxu0
        %v1279 = vadd.f32 %v1052, %v1278
        %1280 = vdwg.mxu0
        %1281 = vst [vmem:[%s363] sm:$0xff] %v1073
        %1282 = vst [vmem:[%s363 + $0x8] sm:$0xff] %v1186
        %1283 = vst [vmem:[%s363 + $0x10] sm:$0xff] %v1076
        %1284 = vst [vmem:[%s363 + $0x18] sm:$0xff] %v1189
        %1285 = vst [vmem:[%s363 + $0x20] sm:$0xff] %v1079
        %1286 = vst [vmem:[%s363 + $0x28] sm:$0xff] %v1192
        %1287 = vst [vmem:[%s363 + $0x30] sm:$0xff] %v1082
        %1288 = vst [vmem:[%s363 + $0x38] sm:$0xff] %v1195
        %1289 = vst [vmem:[%s363 + $0x40] sm:$0xff] %v1085
        %1290 = vst [vmem:[%s363 + $0x48] sm:$0xff] %v1198
        %1291 = vst [vmem:[%s363 + $0x50] sm:$0xff] %v1088
        %1292 = vst [vmem:[%s363 + $0x58] sm:$0xff] %v1201
        %1293 = vst [vmem:[%s363 + $0x60] sm:$0xff] %v1091
        %1294 = vst [vmem:[%s363 + $0x68] sm:$0xff] %v1204
        %1295 = vst [vmem:[%s363 + $0x70] sm:$0xff] %v1094
        %1296 = vst [vmem:[%s363 + $0x78] sm:$0xff] %v1207
        %1297 = vst [vmem:[%s363 + $0x80] sm:$0xff] %v1097
        %1298 = vst [vmem:[%s363 + $0x88] sm:$0xff] %v1210
        %1299 = vst [vmem:[%s363 + $0x90] sm:$0xff] %v1100
        %1300 = vst [vmem:[%s363 + $0x98] sm:$0xff] %v1213
        %1301 = vst [vmem:[%s363 + $0xa0] sm:$0xff] %v1103
        %1302 = vst [vmem:[%s363 + $0xa8] sm:$0xff] %v1216
        %1303 = vst [vmem:[%s363 + $0xb0] sm:$0xff] %v1106
        %1304 = vst [vmem:[%s363 + $0xb8] sm:$0xff] %v1219
        %1305 = vst [vmem:[%s363 + $0xc0] sm:$0xff] %v1109
        %1306 = vst [vmem:[%s363 + $0xc8] sm:$0xff] %v1222
        %1307 = vst [vmem:[%s363 + $0xd0] sm:$0xff] %v1112
        %1308 = vst [vmem:[%s363 + $0xd8] sm:$0xff] %v1225
        %1309 = vst [vmem:[%s363 + $0xe0] sm:$0xff] %v1115
        %1310 = vst [vmem:[%s363 + $0xe8] sm:$0xff] %v1228
        %1311 = vst [vmem:[%s363 + $0xf0] sm:$0xff] %v1118
        %1312 = vst [vmem:[%s363 + $0xf8] sm:$0xff] %v1231
        %1313 = vst [vmem:[%s363 + $0x100] sm:$0xff] %v1121
        %1314 = vst [vmem:[%s363 + $0x108] sm:$0xff] %v1234
        %1315 = vst [vmem:[%s363 + $0x110] sm:$0xff] %v1124
        %1316 = vst [vmem:[%s363 + $0x118] sm:$0xff] %v1237
        %1317 = vst [vmem:[%s363 + $0x120] sm:$0xff] %v1127
        %1318 = vst [vmem:[%s363 + $0x128] sm:$0xff] %v1240
        %1319 = vst [vmem:[%s363 + $0x130] sm:$0xff] %v1130
        %1320 = vst [vmem:[%s363 + $0x138] sm:$0xff] %v1243
        %1321 = vst [vmem:[%s363 + $0x140] sm:$0xff] %v1133
        %1322 = vst [vmem:[%s363 + $0x148] sm:$0xff] %v1246
        %1323 = vst [vmem:[%s363 + $0x150] sm:$0xff] %v1136
        %1324 = vst [vmem:[%s363 + $0x158] sm:$0xff] %v1249
        %1325 = vst [vmem:[%s363 + $0x160] sm:$0xff] %v1139
        %1326 = vst [vmem:[%s363 + $0x168] sm:$0xff] %v1252
        %1327 = vst [vmem:[%s363 + $0x170] sm:$0xff] %v1142
        %1328 = vst [vmem:[%s363 + $0x178] sm:$0xff] %v1255
        %1329 = vst [vmem:[%s363 + $0x180] sm:$0xff] %v1145
        %1330 = vst [vmem:[%s363 + $0x188] sm:$0xff] %v1258
        %1331 = vst [vmem:[%s363 + $0x190] sm:$0xff] %v1148
        %1332 = vst [vmem:[%s363 + $0x198] sm:$0xff] %v1261
        %1333 = vst [vmem:[%s363 + $0x1a0] sm:$0xff] %v1151
        %1334 = vst [vmem:[%s363 + $0x1a8] sm:$0xff] %v1264
        %1335 = vst [vmem:[%s363 + $0x1b0] sm:$0xff] %v1154
        %1336 = vst [vmem:[%s363 + $0x1b8] sm:$0xff] %v1267
        %1337 = vst [vmem:[%s363 + $0x1c0] sm:$0xff] %v1157
        %1338 = vst [vmem:[%s363 + $0x1c8] sm:$0xff] %v1270
        %1339 = vst [vmem:[%s363 + $0x1d0] sm:$0xff] %v1160
        %1340 = vst [vmem:[%s363 + $0x1d8] sm:$0xff] %v1273
        %1341 = vst [vmem:[%s363 + $0x1e0] sm:$0xff] %v1163
        %1342 = vst [vmem:[%s363 + $0x1e8] sm:$0xff] %v1276
        %1343 = vst [vmem:[%s363 + $0x1f0] sm:$0xff] %v1166
        %1344 = vst [vmem:[%s363 + $0x1f8] sm:$0xff] %v1279
        %s1345 = sand.u32 %s186, 1
        %s1346 = scalar_lea.sflag [#allocation4], %s1345
        %s1347 = sand.u32 %s186, 1
        %s1348 = smul.addr %s1347, 512
        %s1349 = scalar_lea.vmem [#allocation11], %s1348
        // Predicated region
        $region69: #{tpu_custom_call.1} parent=47 // pred_check
          %p1350 = pneg %p196
        $region70: #{tpu_custom_call.1} parent=47 // pred_check_branch
          %1352 = sbr.rel (%p1350) target = $region72
        $region71: #{tpu_custom_call.1} parent=47 // pred_region
          %s1353 = smul.u32 32, %s26
          %1355 = vsyncadd %s1346, 0
          %s1356 = smul.addr %s1353, 2
          %s1357 = smul.addr %s1356, 8
          %s1358 = scalar_lea.hbm %s7, %s1357
          %s1359 = sshll.u32 %s1349, 4
          %s1360 = int_to_ptr.vmem [resolvable:$true] %s1359
          %s1361 = sshll.u32 %s1358, 4
          %s1362 = int_to_ptr.hbm [resolvable:$true] %s1361
          %1367 = dma.vmem_to_hbm [thread:$0]  %s1360, 8192, %s1362, %s1346, 256, 256, 16
        $region72: #{tpu_custom_call.1} parent=47 // pred_fallthru
          _
      $region48: #{tpu_custom_call.1} parent=5 // pred_fallthru
        _
      %p1368 = scmp.le.s32.totalorder 2, %s21
      // Predicated region
      $region73: #{tpu_custom_call.1} parent=5 // pred_check
        %p1369 = pneg %p1368
      $region74: #{tpu_custom_call.1} parent=5 // pred_check_branch
        %1371 = sbr.rel (%p1369) target = $region76
      $region75: #{tpu_custom_call.1} parent=5 // pred_region
        %s1372 = ssub.s32 %s21, 2
        // Predicated region
        $region77: #{tpu_custom_call.1} parent=75 // pred_check
          %p1373 = pneg %p202
        $region78: #{tpu_custom_call.1} parent=75 // pred_check_branch
          %1375 = sbr.rel (%p1373) target = $region80
        $region79: #{tpu_custom_call.1} parent=75 // pred_region
          %s1376 = sand.u32 %s187, 1
          %s1377 = scalar_lea.sflag [#allocation4], %s1376
          %s1378 = sand.u32 %s187, 1
          %s1379 = smul.addr %s1378, 512
          %s1380 = scalar_lea.vmem [#allocation11], %s1379
          %1382 = dma.done %s1377, 8192
        $region80: #{tpu_custom_call.1} parent=75 // pred_fallthru
          _
      $region76: #{tpu_custom_call.1} parent=5 // pred_fallthru
        _
    $region6: #{tpu_custom_call.1} parent=1 // loop_footer
      %s25 = sadd.s32 1, %s21
    $region7: #{tpu_custom_call.1} parent=1 // loop_footer_branch
      %20 = sbr.rel target = $region3
    $region8: #{tpu_custom_call.1} parent=1 // loop_exit
      _
    %1383 = vsyncpa [#allocation3], 1
    %s1384 = scalar_lea.sflag [#allocation3], 1
    %1385 = vsyncpa %s1384, 1
    %1386 = vsyncpa [#allocation6], 1
    %1387 = vsyncpa [#allocation9], 1
    %1388 = vsyncpa [#allocation4], 1
    %s1389 = scalar_lea.sflag [#allocation4], 1
    %1390 = vsyncpa %s1389, 1

</llo_original>
